<compile_context>
chip_gen: v5e
topology: v5e:2x2
jax: 0.10.0
libtpu: 0.0.40
codegen_flags: <defaults>
</compile_context>

<pallas_src>
import jax
import jax.numpy as jnp
from jax.experimental import pallas as pl
from jax.experimental.pallas import tpu as pltpu


def _round_up(x, m):
    return ((x + m - 1) // m) * m


# ---------------------------------------------------------------------------
# Kernel 1: MLE loss (CrossEntropyLoss, ignore_index=-100, mean reduction)
# ---------------------------------------------------------------------------
def _make_mle_kernel(vocab, tn, tv):
    def kernel(logits_ref, labels_ref, out_ref, m_ref, s_ref, g_ref):
        vi = pl.program_id(1)

        @pl.when(vi == 0)
        def _():
            m_ref[...] = jnp.full((tn, 1), -jnp.inf, jnp.float32)
            s_ref[...] = jnp.zeros((tn, 1), jnp.float32)
            g_ref[...] = jnp.zeros((tn, 1), jnp.float32)

        x = logits_ref[...].astype(jnp.float32)                    # (tn, tv)
        lab = labels_ref[...]                                      # (tn, 1)

        # Mask the ragged tail of the last vocab tile.
        col = vi * tv + jax.lax.broadcasted_iota(jnp.int32, (tn, tv), 1)
        x = jnp.where(col < vocab, x, -jnp.inf)

        m_prev = m_ref[...]
        m_new = jnp.maximum(m_prev, jnp.max(x, axis=-1, keepdims=True))
        # exp stays f32 (v5e has no bf16 EUP); on v6e/v7x a bf16 exp after the
        # f32 max-subtract would roughly double transcendental throughput.
        s_ref[...] = (s_ref[...] * jnp.exp(m_prev - m_new)
                      + jnp.sum(jnp.exp(x - m_new), axis=-1, keepdims=True))
        # Gold-logit gather without a (tn, vocab) one-hot.  Labels outside
        # [0, vocab) other than -100 silently contribute 0 (PyTorch raises).
        g_ref[...] += jnp.sum(jnp.where(col == lab, x, 0.0),
                              axis=-1, keepdims=True)
        m_ref[...] = m_new

        @pl.when(vi == pl.num_programs(1) - 1)
        def _():
            lse = m_ref[...] + jnp.log(s_ref[...])
            valid = lab != -100                                    # ignore_index
            # Select (not multiply): garbage rows of the ragged last row tile
            # (labels padded to -100) cannot leak NaN/Inf into the sums.
            nll = jnp.where(valid, lse - g_ref[...], 0.0)
            sum_nll = jnp.sum(nll)
            cnt = jnp.sum(valid.astype(jnp.float32))
            lane = jax.lax.broadcasted_iota(jnp.int32, (1, 128), 1)
            out_ref[...] = jnp.where(lane == 0, sum_nll,
                                     jnp.where(lane == 1, cnt, 0.0))

    return kernel


def mle_loss_pallas(logits, labels, *, block_rows=256, block_vocab=2048,
                    vmem_limit_bytes=None):
    bsz, seqlen, vocab = logits.shape
    n = bsz * seqlen
    flat_logits = logits.reshape(n, vocab)          # native dtype, NOT padded

    tn = _round_up(min(block_rows, _round_up(n, 8)), 8)
    tv = _round_up(min(block_vocab, _round_up(vocab, 128)), 128)
    n_rt = pl.cdiv(n, tn)
    n_vt = pl.cdiv(vocab, tv)

    # Labels are tiny: pad them so every row of every tile carries a defined
    # label (-100 == ignored).  The logits themselves are never copied.
    flat_labels = labels.reshape(n).astype(jnp.int32)
    flat_labels = jnp.pad(flat_labels, (0, n_rt * tn - n),
                          constant_values=-100).reshape(n_rt * tn, 1)

    partials = pl.pallas_call(
        _make_mle_kernel(vocab, tn, tv),
        out_shape=jax.ShapeDtypeStruct((n_rt, 1, 128), jnp.float32),
        grid_spec=pltpu.PrefetchScalarGridSpec(
            num_scalar_prefetch=0,
            grid=(n_rt, n_vt),
            in_specs=[
                pl.BlockSpec((tn, tv), lambda r, v: (r, v)),
                pl.BlockSpec((tn, 1), lambda r, v: (r, 0)),
            ],
            out_specs=pl.BlockSpec((None, 1, 128), lambda r, v: (r, 0, 0)),
            scratch_shapes=[
                pltpu.VMEM((tn, 1), jnp.float32),   # running max
                pltpu.VMEM((tn, 1), jnp.float32),   # running sum-exp
                pltpu.VMEM((tn, 1), jnp.float32),   # running gold logit
            ],
        ),
        compiler_params=pltpu.CompilerParams(
            dimension_semantics=("parallel", "arbitrary"),
            vmem_limit_bytes=vmem_limit_bytes),
        cost_estimate=pl.CostEstimate(
            flops=6 * n * vocab,
            transcendentals=n * vocab,
            bytes_accessed=n * vocab * flat_logits.dtype.itemsize
                           + n * 4 + n_rt * 128 * 4),
    )(flat_logits, flat_labels)

    sum_nll = jnp.sum(partials[:, 0, 0])
    cnt = jnp.sum(partials[:, 0, 1])
    # NaN when every label is ignored -- same as torch.nn.CrossEntropyLoss.
    return sum_nll / cnt


# ---------------------------------------------------------------------------
# Kernel 2: contrastive loss
# ---------------------------------------------------------------------------
def _make_cl_kernel(margin, ts):
    def kernel(vlen_ref, ni_ref, nj_ref, imask_ref, out_ref):
        b = pl.program_id(0)
        it = pl.program_id(1)
        jt = pl.program_id(2)

        @pl.when(jt == 0)
        def _():
            out_ref[...] = jnp.zeros((1, ts), jnp.float32)

        vlen = vlen_ref[b]

        # Skip tiles that lie entirely in the padded region.
        @pl.when((it * ts < vlen) & (jt * ts < vlen))
        def _():
            # Cosine-similarity tile on the MXU: pre-normalized bf16 operands,
            # f32 accumulation.
            scores = jax.lax.dot_general(
                ni_ref[...], nj_ref[...], (((1,), (1,)), ((), ())),
                preferred_element_type=jnp.float32)                # (ts, ts)
            # gold == cos(x, x) == 1.0 after L2 normalization, so
            # relu(margin - (gold - score)) == relu(margin - 1 + score).
            loss = jnp.maximum(margin - 1.0 + scores, 0.0)

            i_glob = it * ts + jax.lax.broadcasted_iota(jnp.int32, (ts, ts), 0)
            j_glob = jt * ts + jax.lax.broadcasted_iota(jnp.int32, (ts, ts), 1)
            keep = ((i_glob != j_glob)
                    & (i_glob < vlen) & (j_glob < vlen)
                    & (imask_ref[...] > 0.5))          # (ts, 1) row input mask
            masked = jnp.where(keep, loss, 0.0)
            # Per-column sums (sublane reduction) -> lane-dense accumulate.
            out_ref[...] += jnp.sum(masked, axis=0, keepdims=True)

    return kernel


def contrastive_loss_pallas(last_hidden_states, input_ids, margin, pad_token_id,
                            *, block_seq=256, vmem_limit_bytes=None):
    bsz, seqlen, dim = last_hidden_states.shape
    ids = input_ids.astype(jnp.int32)

    ts = _round_up(min(block_seq, _round_up(seqlen, 8)), 8)
    s_pad = _round_up(seqlen, ts)
    n_t = s_pad // ts

    nonpad = ids != pad_token_id
    vlen = jnp.sum(nonpad, axis=-1).astype(jnp.int32)               # (B,)
    imask = nonpad.astype(jnp.float32)[..., None]                   # (B, S, 1)

    # Pre-normalize ONCE (f32 math, bf16 output for the MXU); padding to the
    # tile multiple is folded into this pass.  Padded rows are zero vectors at
    # indices >= seqlen >= vlen, so the in-kernel masks remove them.
    h = last_hidden_states.astype(jnp.float32)
    nr = (h * jax.lax.rsqrt(jnp.sum(h * h, axis=-1, keepdims=True))
          ).astype(jnp.bfloat16)
    if s_pad != seqlen:
        pad = s_pad - seqlen
        nr = jnp.pad(nr, ((0, 0), (0, pad), (0, 0)))
        imask = jnp.pad(imask, ((0, 0), (0, pad), (0, 0)))

    col_sums = pl.pallas_call(
        _make_cl_kernel(float(margin), ts),
        out_shape=jax.ShapeDtypeStruct((bsz, n_t, 1, ts), jnp.float32),
        grid_spec=pltpu.PrefetchScalarGridSpec(
            num_scalar_prefetch=1,                      # vlen -> SMEM
            grid=(bsz, n_t, n_t),
            in_specs=[
                pl.BlockSpec((None, ts, dim), lambda b, i, j, vl: (b, i, 0)),
                pl.BlockSpec((None, ts, dim), lambda b, i, j, vl: (b, j, 0)),
                pl.BlockSpec((None, ts, 1), lambda b, i, j, vl: (b, i, 0)),
            ],
            out_specs=pl.BlockSpec((None, None, 1, ts),
                                   lambda b, i, j, vl: (b, i, 0, 0)),
        ),
        compiler_params=pltpu.CompilerParams(
            dimension_semantics=("parallel", "parallel", "arbitrary"),
            vmem_limit_bytes=vmem_limit_bytes),
        cost_estimate=pl.CostEstimate(
            flops=2 * bsz * s_pad * s_pad * dim,
            transcendentals=0,
            bytes_accessed=2 * bsz * s_pad * dim * 2 + bsz * s_pad * 8),
    )(vlen, nr, nr, imask)

    num = jnp.sum(col_sums)
    vlen_f = vlen.astype(jnp.float32)
    den = jnp.sum(vlen_f * (vlen_f - 1.0))     # == sum(loss_mask), analytic
    # NaN when every token is padding (0/0) -- matches the PyTorch reference.
    return num / den


# ---------------------------------------------------------------------------
# SimCTGLoss wrapper (forward pass semantics of the PyTorch module)
# ---------------------------------------------------------------------------
class SimCTGLossPallas:
    def __init__(self, margin, vocab_size, pad_token_id,
                 mle_block_rows=256, mle_block_vocab=2048, cl_block_seq=256,
                 vmem_limit_bytes=None):
        # Defaults target v6e/v7x; use 128-sized blocks on v5e.
        self.margin = float(margin)
        self.vocab_size = int(vocab_size)
        self.pad_token_id = int(pad_token_id)
        self.mle_block_rows = int(mle_block_rows)
        self.mle_block_vocab = int(mle_block_vocab)
        self.cl_block_seq = int(cl_block_seq)
        self.vmem_limit_bytes = vmem_limit_bytes

    def __call__(self, last_hidden_states, logits, input_ids, labels):
        del input_ids   # forward() passes `labels` as input_ids downstream
        bsz, seqlen = labels.shape
        assert logits.shape == (bsz, seqlen, self.vocab_size)
        mle_loss = mle_loss_pallas(
            logits, labels,
            block_rows=self.mle_block_rows, block_vocab=self.mle_block_vocab,
            vmem_limit_bytes=self.vmem_limit_bytes)
        cl_loss = contrastive_loss_pallas(
            last_hidden_states, labels, self.margin, self.pad_token_id,
            block_seq=self.cl_block_seq, vmem_limit_bytes=self.vmem_limit_bytes)
        return mle_loss, cl_loss


# ---------------------------------------------------------------------------
# Pure-JAX reference (mirrors the PyTorch code) for verification
# ---------------------------------------------------------------------------
def _ref_forward(hidden, logits, labels, margin, pad_token_id):
    bsz, seqlen, vocab = logits.shape
    flat_logits = logits.reshape(-1, vocab).astype(jnp.float32)
    flat_labels = labels.reshape(-1)
    logp = jax.nn.log_softmax(flat_logits, axis=-1)
    gather_idx = jnp.clip(flat_labels, 0, vocab - 1)[:, None]
    nll = -jnp.take_along_axis(logp, gather_idx, axis=-1)[:, 0]
    valid = (flat_labels != -100).astype(jnp.float32)
    mle = jnp.sum(nll * valid) / jnp.sum(valid)

    h = hidden.astype(jnp.float32)
    nr = h / jnp.linalg.norm(h, axis=2, keepdims=True)
    scores = jnp.einsum('bsd,btd->bst', nr, nr)
    gold = jnp.diagonal(scores, axis1=1, axis2=2)[..., None]
    loss = jnp.maximum(margin - (gold - scores), 0.0)
    inp_mask = (labels != pad_token_id).astype(jnp.float32)
    vlen = jnp.sum(inp_mask, axis=-1)[:, None, None]
    i_idx = jnp.arange(seqlen)[None, :, None].astype(jnp.float32)
    j_idx = jnp.arange(seqlen)[None, None, :].astype(jnp.float32)
    eye = jnp.eye(seqlen)[None]
    loss_mask = (1.0 - eye) * (i_idx < vlen) * (j_idx < vlen)
    row = jnp.sum(loss * loss_mask, axis=-1) * inp_mask
    cl = jnp.sum(row) / jnp.sum(loss_mask)
    return mle, cl


if __name__ == "__main__":
    bsz, seqlen, embed_dim, vocab_size = 2, 160, 64, 384
    margin, pad_token_id = 0.5, 0

    key = jax.random.PRNGKey(0)
    k1, k2, k3, k4 = jax.random.split(key, 4)
    # shared component so cosine similarities are large enough for nonzero loss
    base = jax.random.normal(k4, (embed_dim,), jnp.float32)
    last_hidden_states = (base[None, None, :]
                          + 0.7 * jax.random.normal(k1, (bsz, seqlen, embed_dim),
                                                    jnp.float32))
    logits = jax.random.normal(k2, (bsz, seqlen, vocab_size), jnp.float32)
    labels = jax.random.randint(k3, (bsz, seqlen), 1, vocab_size, jnp.int32)
    labels = labels.at[1, seqlen - 80:].set(pad_token_id)   # trailing padding
    labels = labels.at[0, :3].set(-100)                     # ignored MLE tokens
    input_ids = labels                                       # forward() uses labels

    # Small blocks so the toy shapes exercise multi-tile grids, the ragged
    # (unpadded-logits) row/vocab tiles, and the fully-padded CL tile skip.
    loss_fn = SimCTGLossPallas(margin, vocab_size, pad_token_id,
                               mle_block_rows=128, mle_block_vocab=256,
                               cl_block_seq=128)
    mle_loss, cl_loss = loss_fn(last_hidden_states, logits, input_ids, labels)
    jax.block_until_ready((mle_loss, cl_loss))

    ref_mle, ref_cl = _ref_forward(last_hidden_states, logits, labels,
                                   margin, pad_token_id)
    assert jnp.allclose(mle_loss, ref_mle, atol=1e-4, rtol=1e-4), (mle_loss, ref_mle)
    # CL scores use bf16 MXU inputs (f32 accumulation) -> slightly looser tol
    assert jnp.allclose(cl_loss, ref_cl, atol=5e-3, rtol=5e-3), (cl_loss, ref_cl)

    print("KERNEL_OK")
</pallas_src>

<mosaic_0001>
module attributes {stable_mosaic.version = 11 : i64} {
  func.func @kernel(%arg0: i32, %arg1: i32, %arg2: memref<128x256xf32, #tpu.memory_space<vmem>>, %arg3: memref<128x1xi32, #tpu.memory_space<vmem>>, %arg4: memref<1x1x128xf32, #tpu.memory_space<vmem>>, %arg5: memref<128x1xf32, #tpu.memory_space<vmem>>, %arg6: memref<128x1xf32, #tpu.memory_space<vmem>>, %arg7: memref<128x1xf32, #tpu.memory_space<vmem>>) attributes {dimension_semantics = [#tpu.dimension_semantics<parallel>, #tpu.dimension_semantics<arbitrary>], iteration_bounds = array<i64: 3, 2>, scalar_prefetch = 0 : i64, scratch_operands = 3 : i64, tpu.core_type = #tpu.core_type<tc>, window_params = [{transform_indices = @transform_0, window_bounds = array<i64: 128, 256>}, {transform_indices = @transform_1, window_bounds = array<i64: 128, 1>}, {transform_indices = @transform_2, window_bounds = array<i64: 1, 1, 128>}]} {
    %c0_i32 = arith.constant 0 : i32
    %0 = arith.cmpi eq, %arg1, %c0_i32 : i32
    %1 = arith.extui %0 : i1 to i32
    %c0_i32_0 = arith.constant 0 : i32
    %2 = arith.cmpi ne, %1, %c0_i32_0 : i32
    scf.if %2 {
      %cst_21 = arith.constant 0xFF800000 : f32
      %41 = vector.broadcast %cst_21 : f32 to vector<128x1xf32>
      %c0_22 = arith.constant 0 : index
      %c0_23 = arith.constant 0 : index
      %42 = vector.load %arg5[%c0_22, %c0_23] : memref<128x1xf32, #tpu.memory_space<vmem>>, vector<128x1xf32>
      tpu.vector_store %arg5[%c0_22, %c0_23], %41 {strides = array<i32>} : memref<128x1xf32, #tpu.memory_space<vmem>>, vector<128x1xf32>,
      %cst_24 = arith.constant 0.000000e+00 : f32
      %43 = vector.broadcast %cst_24 : f32 to vector<128x1xf32>
      %c0_25 = arith.constant 0 : index
      %c0_26 = arith.constant 0 : index
      %44 = vector.load %arg6[%c0_25, %c0_26] : memref<128x1xf32, #tpu.memory_space<vmem>>, vector<128x1xf32>
      tpu.vector_store %arg6[%c0_25, %c0_26], %43 {strides = array<i32>} : memref<128x1xf32, #tpu.memory_space<vmem>>, vector<128x1xf32>,
      %cst_27 = arith.constant 0.000000e+00 : f32
      %45 = vector.broadcast %cst_27 : f32 to vector<128x1xf32>
      %c0_28 = arith.constant 0 : index
      %c0_29 = arith.constant 0 : index
      %46 = vector.load %arg7[%c0_28, %c0_29] : memref<128x1xf32, #tpu.memory_space<vmem>>, vector<128x1xf32>
      tpu.vector_store %arg7[%c0_28, %c0_29], %45 {strides = array<i32>} : memref<128x1xf32, #tpu.memory_space<vmem>>, vector<128x1xf32>,
    } else {
    }
    %c0 = arith.constant 0 : index
    %c0_1 = arith.constant 0 : index
    %3 = vector.load %arg2[%c0, %c0_1] : memref<128x256xf32, #tpu.memory_space<vmem>>, vector<128x256xf32>
    %c0_2 = arith.constant 0 : index
    %c0_3 = arith.constant 0 : index
    %4 = vector.load %arg3[%c0_2, %c0_3] : memref<128x1xi32, #tpu.memory_space<vmem>>, vector<128x1xi32>
    %c256_i32 = arith.constant 256 : i32
    %5 = arith.muli %arg1, %c256_i32 : i32
    %6 = tpu.iota {dimensions = array<i32: 1>} : vector<128x256xi32>
    %7 = vector.broadcast %5 : i32 to vector<128x256xi32>
    %8 = arith.addi %7, %6 : vector<128x256xi32>
    %c384_i32 = arith.constant 384 : i32
    %9 = vector.broadcast %c384_i32 : i32 to vector<128x256xi32>
    %10 = arith.cmpi slt, %8, %9 : vector<128x256xi32>
    %cst = arith.constant 0xFF800000 : f32
    %11 = vector.broadcast %cst : f32 to vector<128x256xf32>
    %12 = arith.select %10, %3, %11 : vector<128x256xi1>, vector<128x256xf32>
    %c0_4 = arith.constant 0 : index
    %c0_5 = arith.constant 0 : index
    %13 = vector.load %arg5[%c0_4, %c0_5] : memref<128x1xf32, #tpu.memory_space<vmem>>, vector<128x1xf32>
    %cst_6 = arith.constant dense<0xFF800000> : vector<128xf32>
    %14 = vector.multi_reduction <maximumf>, %12, %cst_6 [1] : vector<128x256xf32> to vector<128xf32>
    %15 = vector.shape_cast %14 : vector<128xf32> to vector<128x1xf32>
    %16 = arith.maximumf %13, %15 : vector<128x1xf32>
    %c0_7 = arith.constant 0 : index
    %c0_8 = arith.constant 0 : index
    %17 = vector.load %arg6[%c0_7, %c0_8] : memref<128x1xf32, #tpu.memory_space<vmem>>, vector<128x1xf32>
    %18 = arith.subf %13, %16 : vector<128x1xf32>
    %19 = math.exp %18 : vector<128x1xf32>
    %20 = arith.mulf %17, %19 : vector<128x1xf32>
    %21 = vector.broadcast %16 : vector<128x1xf32> to vector<128x256xf32>
    %22 = arith.subf %12, %21 : vector<128x256xf32>
    %23 = math.exp %22 : vector<128x256xf32>
    %cst_9 = arith.constant dense<0.000000e+00> : vector<128xf32>
    %24 = vector.multi_reduction <add>, %23, %cst_9 [1] : vector<128x256xf32> to vector<128xf32>
    %25 = vector.shape_cast %24 : vector<128xf32> to vector<128x1xf32>
    %26 = arith.addf %20, %25 : vector<128x1xf32>
    %c0_10 = arith.constant 0 : index
    %c0_11 = arith.constant 0 : index
    %27 = vector.load %arg6[%c0_10, %c0_11] : memref<128x1xf32, #tpu.memory_space<vmem>>, vector<128x1xf32>
    tpu.vector_store %arg6[%c0_10, %c0_11], %26 {strides = array<i32>} : memref<128x1xf32, #tpu.memory_space<vmem>>, vector<128x1xf32>,
    %c0_12 = arith.constant 0 : index
    %c0_13 = arith.constant 0 : index
    %28 = vector.load %arg7[%c0_12, %c0_13] : memref<128x1xf32, #tpu.memory_space<vmem>>, vector<128x1xf32>
    %29 = vector.broadcast %4 : vector<128x1xi32> to vector<128x256xi32>
    %30 = arith.cmpi eq, %8, %29 : vector<128x256xi32>
    %cst_14 = arith.constant 0.000000e+00 : f32
    %31 = vector.broadcast %cst_14 : f32 to vector<128x256xf32>
    %32 = arith.select %30, %12, %31 : vector<128x256xi1>, vector<128x256xf32>
    %cst_15 = arith.constant dense<0.000000e+00> : vector<128xf32>
    %33 = vector.multi_reduction <add>, %32, %cst_15 [1] : vector<128x256xf32> to vector<128xf32>
    %34 = vector.shape_cast %33 : vector<128xf32> to vector<128x1xf32>
    %35 = arith.addf %28, %34 : vector<128x1xf32>
    %c0_16 = arith.constant 0 : index
    %c0_17 = arith.constant 0 : index
    %36 = vector.load %arg7[%c0_16, %c0_17] : memref<128x1xf32, #tpu.memory_space<vmem>>, vector<128x1xf32>
    tpu.vector_store %arg7[%c0_16, %c0_17], %35 {strides = array<i32>} : memref<128x1xf32, #tpu.memory_space<vmem>>, vector<128x1xf32>,
    %c0_18 = arith.constant 0 : index
    %c0_19 = arith.constant 0 : index
    %37 = vector.load %arg5[%c0_18, %c0_19] : memref<128x1xf32, #tpu.memory_space<vmem>>, vector<128x1xf32>
    tpu.vector_store %arg5[%c0_18, %c0_19], %16 {strides = array<i32>} : memref<128x1xf32, #tpu.memory_space<vmem>>, vector<128x1xf32>,
    %c1_i32 = arith.constant 1 : i32
    %38 = arith.cmpi eq, %arg1, %c1_i32 : i32
    %39 = arith.extui %38 : i1 to i32
    %c0_i32_20 = arith.constant 0 : i32
    %40 = arith.cmpi ne, %39, %c0_i32_20 : i32
    scf.if %40 {
      %c0_21 = arith.constant 0 : index
      %c0_22 = arith.constant 0 : index
      %41 = vector.load %arg5[%c0_21, %c0_22] : memref<128x1xf32, #tpu.memory_space<vmem>>, vector<128x1xf32>
      %c0_23 = arith.constant 0 : index
      %c0_24 = arith.constant 0 : index
      %42 = vector.load %arg6[%c0_23, %c0_24] : memref<128x1xf32, #tpu.memory_space<vmem>>, vector<128x1xf32>
      %43 = math.log %42 : vector<128x1xf32>
      %44 = arith.addf %41, %43 : vector<128x1xf32>
      %c-100_i32 = arith.constant -100 : i32
      %45 = vector.broadcast %c-100_i32 : i32 to vector<128x1xi32>
      %46 = arith.cmpi ne, %4, %45 : vector<128x1xi32>
      %c0_25 = arith.constant 0 : index
      %c0_26 = arith.constant 0 : index
      %47 = vector.load %arg7[%c0_25, %c0_26] : memref<128x1xf32, #tpu.memory_space<vmem>>, vector<128x1xf32>
      %48 = arith.subf %44, %47 : vector<128x1xf32>
      %cst_27 = arith.constant 0.000000e+00 : f32
      %49 = vector.broadcast %cst_27 : f32 to vector<128x1xf32>
      %50 = arith.select %46, %48, %49 : vector<128x1xi1>, vector<128x1xf32>
      %51 = vector.shape_cast %50 : vector<128x1xf32> to vector<1x128x1xf32>
      %cst_28 = arith.constant dense<0.000000e+00> : vector<1xf32>
      %52 = vector.multi_reduction <add>, %51, %cst_28 [1, 2] : vector<1x128x1xf32> to vector<1xf32>
      %53 = vector.shape_cast %52 : vector<1xf32> to vector<1x1x1xf32>
      %54 = vector.extract %53[0, 0, 0] : f32 from vector<1x1x1xf32>
      %55 = arith.extui %46 : vector<128x1xi1> to vector<128x1xi32>
      %56 = arith.sitofp %55 : vector<128x1xi32> to vector<128x1xf32>
      %57 = vector.shape_cast %56 : vector<128x1xf32> to vector<1x128x1xf32>
      %cst_29 = arith.constant dense<0.000000e+00> : vector<1xf32>
      %58 = vector.multi_reduction <add>, %57, %cst_29 [1, 2] : vector<1x128x1xf32> to vector<1xf32>
      %59 = vector.shape_cast %58 : vector<1xf32> to vector<1x1x1xf32>
      %60 = vector.extract %59[0, 0, 0] : f32 from vector<1x1x1xf32>
      %61 = tpu.iota {dimensions = array<i32: 1>} : vector<1x128xi32>
      %c0_i32_30 = arith.constant 0 : i32
      %62 = vector.broadcast %c0_i32_30 : i32 to vector<1x128xi32>
      %63 = arith.cmpi eq, %61, %62 : vector<1x128xi32>
      %c1_i32_31 = arith.constant 1 : i32
      %64 = vector.broadcast %c1_i32_31 : i32 to vector<1x128xi32>
      %65 = arith.cmpi eq, %61, %64 : vector<1x128xi32>
      %cst_32 = arith.constant 0.000000e+00 : f32
      %66 = vector.broadcast %60 : f32 to vector<1x128xf32>
      %67 = vector.broadcast %cst_32 : f32 to vector<1x128xf32>
      %68 = arith.select %65, %66, %67 : vector<1x128xi1>, vector<1x128xf32>
      %69 = vector.broadcast %54 : f32 to vector<1x128xf32>
      %70 = arith.select %63, %69, %68 : vector<1x128xi1>, vector<1x128xf32>
      %c0_33 = arith.constant 0 : index
      %c0_34 = arith.constant 0 : index
      %c0_35 = arith.constant 0 : index
      %71 = vector.load %arg4[%c0_33, %c0_34, %c0_35] : memref<1x1x128xf32, #tpu.memory_space<vmem>>, vector<1x1x128xf32>
      %72 = vector.shape_cast %71 : vector<1x1x128xf32> to vector<1x128xf32>
      %73 = vector.shape_cast %70 : vector<1x128xf32> to vector<1x1x128xf32>
      tpu.vector_store %arg4[%c0_33, %c0_34, %c0_35], %73 {strides = array<i32>} : memref<1x1x128xf32, #tpu.memory_space<vmem>>, vector<1x1x128xf32>,
    } else {
    }
    return
  }
  func.func @transform_0(%arg0: i32, %arg1: i32) -> (i32, i32) {
    %c0_i32 = arith.constant 0 : i32
    return %arg0, %arg1 : i32, i32
  }
  func.func @transform_1(%arg0: i32, %arg1: i32) -> (i32, i32) {
    %c0_i32 = arith.constant 0 : i32
    %c0_i32_0 = arith.constant 0 : i32
    return %arg0, %c0_i32 : i32, i32
  }
  func.func @transform_2(%arg0: i32, %arg1: i32) -> (i32, i32, i32) {
    %c0_i32 = arith.constant 0 : i32
    %c0_i32_0 = arith.constant 0 : i32
    %c0_i32_1 = arith.constant 0 : i32
    return %arg0, %c0_i32, %c0_i32_0 : i32, i32, i32
  }
}

</mosaic_0001>

<llo_original>
// kernel: tpu_custom_call.1
$region0: #{tpu_custom_call.1}
  #allocation0 [shape = 'u32[]', space=smem, size = 0x4, offset = 0x4, fixed_abs, tag = 'smem constant byte address 0x4 - core index']
  #allocation1 [shape = 'u32[72,128]{1,0:T(1,128)}', space=vmem, size = 0x9000, scoped, tag = 'internal scratch']
  #allocation2 [shape = 'f32[128,1]{1,0:T(8,128)}', space=vmem, size = 0x10000, scoped, tag = 'scratch operand']
  #allocation3 [shape = 'f32[128,1]{1,0:T(8,128)}', space=vmem, size = 0x10000, scoped, tag = 'scratch operand']
  #allocation4 [shape = 'f32[128,1]{1,0:T(8,128)}', space=vmem, size = 0x10000, scoped, tag = 'scratch operand']
  %s0 = inlined_call_operand.hbm [shape: f32[320,384], index: 0, kind: input, shape index: {}]
  %s1 = inlined_call_operand.vmem [shape: s32[384,1], index: 1, kind: input, shape index: {}]
  %s2 = inlined_call_operand.hbm [shape: f32[3,1,128], index: 2, kind: output, shape index: {}]
  %s3 = sld [smem:[#allocation0]]
  $region53: #{tpu_custom_call.1} parent=0
    _
  %s5 = ssub.s32 1, %s3
  %s6 = scalar_select 0, %s5, %s3
  $region1: #{tpu_custom_call.1} parent=0
    #allocation5 [shape = 'u8[262144]{0}', space=vmem, size = 0x40000, scoped, tag = 'input window, operand 0']
    #allocation6 [shape = 's32[2]{0}', space=sflag, size = 0x8, scoped, tag = 'scoped memory for tpu_custom_call.1']
    #allocation7 [shape = 's32[2]{0}', space=sflag, size = 0x8, scoped, tag = 'scoped memory for tpu_custom_call.1']
    #allocation8 [shape = 'u8[1024]{0}', space=vmem, size = 0x400, scoped, tag = 'output window, operand 0']
    %7 = vsyncpa [#allocation6], 0
    %s8 = scalar_lea.sflag [#allocation6], 1
    %9 = vsyncpa %s8, 0
    %10 = vsyncpa [#allocation7], 0
    %s11 = scalar_lea.sflag [#allocation7], 1
    %12 = vsyncpa %s11, 0
    loop: start=0, step=1, limit=8
    $region2: #{tpu_custom_call.1} parent=1 // loop_pre_header
      _
    $region3: #{tpu_custom_call.1} parent=1 // loop_header
      %s14 = sphi 0, %s18
      %p15 = scmp.ge.s32.totalorder %s14, 8
      %s21 = sphi 0, %s33
      %s22 = sphi 0, %s29
      %s23 = sphi 0, %s21
      %s24 = sphi 0, %s22
      %s25 = sphi 0, %s23
      %s26 = sphi 0, %s24
      %s38 = sphi 0, %s40
      %s41 = sphi 0, %s38
      %s42 = sphi 0, %s41
      %s58 = sphi 0, %s42
      %s64 = sphi 0, %s66
      %s67 = sphi 0, %s64
      %s68 = sphi 0, %s67
      %s84 = sphi 0, %s68
      %s90 = sphi 0, %s92
      %s93 = sphi 0, %s90
      %s94 = sphi 0, %s93
      %s110 = sphi 0, %s94
    $region4: #{tpu_custom_call.1} parent=1 // loop_header_branch
      %17 = sbr.rel (%p15) target = $region8
    $region5: #{tpu_custom_call.1} parent=1 // loop_body
      %s19 = ssub.s32 %s14, 1
      %s20 = ssub.s32 %s14, 2
      %s27 = sadd.s32 1, %s22
      %p28 = scmp.ge.s32.totalorder %s27, 2
      %s29 = scalar_select %p28, 0, %s27
      %s30 = sadd.s32 1, %s21
      %s31 = scalar_select %p28, %s30, %s21
      %p32 = scmp.ge.s32.totalorder %s31, 3
      %s33 = scalar_select %p32, 0, %s31
      %s34 = ssub.s32 %s21, %s33
      %s35 = ssub.s32 %s22, %s29
      %s36 = sor.u32 %s34, %s35
      %p37 = scmp.eq.s32.totalorder %s36, 0
      %s39 = sadd.s32 %s38, 1
      %s40 = scalar_select %p37, %s38, %s39
      %p43 = pneg %p37
      %p44 = scmp.eq.s32.totalorder %s14, 5
      %p45 = por %p43, %p44
      %p46 = scmp.ne.s32.totalorder %s38, %s41
      %p47 = scmp.eq.s32.totalorder %s14, 0
      %p48 = por %p46, %p47
      %p49 = scmp.ne.s32.totalorder %s38, %s41
      %p50 = scmp.eq.s32.totalorder %s19, 5
      %p51 = por %p49, %p50
      %p52 = scmp.ne.s32.totalorder %s41, %s42
      %p53 = scmp.eq.s32.totalorder %s19, 0
      %p54 = por %p52, %p53
      %p55 = scmp.ne.s32.totalorder %s41, %s42
      %p56 = scmp.eq.s32.totalorder %s20, 5
      %p57 = por %p55, %p56
      %p59 = scmp.ne.s32.totalorder %s42, %s58
      %p60 = scmp.eq.s32.totalorder %s20, 0
      %p61 = por %p59, %p60
      %s62 = ssub.s32 %s21, %s33
      %p63 = scmp.eq.s32.totalorder %s62, 0
      %s65 = sadd.s32 %s64, 1
      %s66 = scalar_select %p63, %s64, %s65
      %p69 = pneg %p63
      %p70 = scmp.eq.s32.totalorder %s14, 5
      %p71 = por %p69, %p70
      %p72 = scmp.ne.s32.totalorder %s64, %s67
      %p73 = scmp.eq.s32.totalorder %s14, 0
      %p74 = por %p72, %p73
      %p75 = scmp.ne.s32.totalorder %s64, %s67
      %p76 = scmp.eq.s32.totalorder %s19, 5
      %p77 = por %p75, %p76
      %p78 = scmp.ne.s32.totalorder %s67, %s68
      %p79 = scmp.eq.s32.totalorder %s19, 0
      %p80 = por %p78, %p79
      %p81 = scmp.ne.s32.totalorder %s67, %s68
      %p82 = scmp.eq.s32.totalorder %s20, 5
      %p83 = por %p81, %p82
      %p85 = scmp.ne.s32.totalorder %s68, %s84
      %p86 = scmp.eq.s32.totalorder %s20, 0
      %p87 = por %p85, %p86
      %s88 = ssub.s32 %s21, %s33
      %p89 = scmp.eq.s32.totalorder %s88, 0
      %s91 = sadd.s32 %s90, 1
      %s92 = scalar_select %p89, %s90, %s91
      %p95 = pneg %p89
      %p96 = scmp.eq.s32.totalorder %s14, 5
      %p97 = por %p95, %p96
      %p98 = scmp.ne.s32.totalorder %s90, %s93
      %p99 = scmp.eq.s32.totalorder %s14, 0
      %p100 = por %p98, %p99
      %p101 = scmp.ne.s32.totalorder %s90, %s93
      %p102 = scmp.eq.s32.totalorder %s19, 5
      %p103 = por %p101, %p102
      %p104 = scmp.ne.s32.totalorder %s93, %s94
      %p105 = scmp.eq.s32.totalorder %s19, 0
      %p106 = por %p104, %p105
      %p107 = scmp.ne.s32.totalorder %s93, %s94
      %p108 = scmp.eq.s32.totalorder %s20, 5
      %p109 = por %p107, %p108
      %p111 = scmp.ne.s32.totalorder %s94, %s110
      %p112 = scmp.eq.s32.totalorder %s20, 0
      %p113 = por %p111, %p112
      %p114 = scmp.le.s32.totalorder 1, %s14
      %p115 = scmp.lt.s32.totalorder %s14, 7
      %p116 = pnand %p114, %p115
      %p117 = pneg %p116
      // Predicated region
      $region9: #{tpu_custom_call.1} parent=5 // pred_check
        _
      $region10: #{tpu_custom_call.1} parent=5 // pred_check_branch
        %119 = sbr.rel (%p116) target = $region12
      $region11: #{tpu_custom_call.1} parent=5 // pred_region
        %s120 = ssub.s32 %s14, 1
      $region12: #{tpu_custom_call.1} parent=5 // pred_fallthru
        _
      %p121 = scmp.lt.s32.totalorder %s14, 6
      // Predicated region
      $region13: #{tpu_custom_call.1} parent=5 // pred_check
        %p122 = pneg %p121
      $region14: #{tpu_custom_call.1} parent=5 // pred_check_branch
        %124 = sbr.rel (%p122) target = $region16
      $region15: #{tpu_custom_call.1} parent=5 // pred_region
        // Predicated region
        $region17: #{tpu_custom_call.1} parent=15 // pred_check
          %p125 = pneg %p48
        $region18: #{tpu_custom_call.1} parent=15 // pred_check_branch
          %127 = sbr.rel (%p125) target = $region20
        $region19: #{tpu_custom_call.1} parent=15 // pred_region
          %s128 = sand.u32 %s38, 1
          %s129 = scalar_lea.sflag [#allocation6], %s128
          %s130 = sand.u32 %s38, 1
          %s131 = smul.addr %s130, 256
          %s132 = scalar_lea.vmem [#allocation5], %s131
          %s133 = smul.u32 16, %s21
          %s134 = smul.u32 2, %s22
          %s135 = ssub.s32 40, %s133
          %p136 = scmp.lt.s32.totalorder %s135, 16
          %s137 = scalar_select %p136, %s135, 16
          %s138 = smul.u32 8, %s137
          %s139 = ssub.s32 3, %s134
          %p140 = scmp.lt.s32.totalorder %s139, 2
          %s141 = scalar_select %p140, %s139, 2
          %s142 = smul.u32 %s138, %s141
          %s143 = ssub.s32 256, %s142
          %s144 = sshll.u32 %s143, 4
          %145 = vsyncadd %s129, %s144
          %p146 = scmp.ne.s32.totalorder 0, %s142
          %s147 = smul.addr %s133, 3
          %s148 = sadd.s32 %s134, %s147
          %s149 = smul.addr %s148, 8
          %s150 = scalar_lea.hbm %s0, %s149
          %s151 = smul.u32 %s141, 8
          %s152 = smul.u32 %s151, %s137
          %s153 = sshll.u32 %s150, 4
          %s154 = int_to_ptr.hbm [resolvable:$true] %s153
          %s155 = sshll.u32 %s132, 4
          %s156 = int_to_ptr.vmem [resolvable:$true] %s155
          %s157 = sshll.u32 %s152, 4
          %161 = dma.hbm_to_vmem [thread:$0]  (%p146), %s154, %s157, %s156, %s129, 384, 256, %s151
        $region20: #{tpu_custom_call.1} parent=15 // pred_fallthru
          _
        // Predicated region
        $region21: #{tpu_custom_call.1} parent=15 // pred_check
          %p162 = pneg %p74
        $region22: #{tpu_custom_call.1} parent=15 // pred_check_branch
          %164 = sbr.rel (%p162) target = $region24
        $region23: #{tpu_custom_call.1} parent=15 // pred_region
          %s165 = smul.u32 16, %s21
          %p166 = scmp.lt.s32.totalorder %s165, 47
          %s167 = scalar_select %p166, %s165, 47
          %s168 = smul.addr %s167, 8
          %s169 = scalar_lea.vmem %s1, %s168
          %s170 = smul.u32 16, %s21
        $region24: #{tpu_custom_call.1} parent=15 // pred_fallthru
          _
      $region16: #{tpu_custom_call.1} parent=5 // pred_fallthru
        _
      %p171 = scmp.le.s32.totalorder 1, %s14
      %p172 = scmp.lt.s32.totalorder %s14, 7
      %p173 = pnand %p171, %p172
      %p174 = pneg %p173
      // Predicated region
      $region25: #{tpu_custom_call.1} parent=5 // pred_check
        _
      $region26: #{tpu_custom_call.1} parent=5 // pred_check_branch
        %176 = sbr.rel (%p173) target = $region28
      $region27: #{tpu_custom_call.1} parent=5 // pred_region
        %s177 = ssub.s32 %s14, 1
        %s178 = sand.u32 %s41, 1
        %s179 = scalar_lea.sflag [#allocation6], %s178
        %s180 = sand.u32 %s41, 1
        %s181 = smul.addr %s180, 256
        %s182 = scalar_lea.vmem [#allocation5], %s181
        // Predicated region
        $region29: #{tpu_custom_call.1} parent=27 // pred_check
          %p183 = pneg %p54
        $region30: #{tpu_custom_call.1} parent=27 // pred_check_branch
          %185 = sbr.rel (%p183) target = $region32
        $region31: #{tpu_custom_call.1} parent=27 // pred_region
          %187 = dma.done %s179, 4096
        $region32: #{tpu_custom_call.1} parent=27 // pred_fallthru
          _
        %s188 = sand.u32 %s41, 1
        %s189 = scalar_lea.sflag [#allocation6], %s188
        %s190 = sand.u32 %s41, 1
        %s191 = smul.addr %s190, 256
        %s192 = scalar_lea.vmem [#allocation5], %s191
        %p193 = pneg %p54
        %p194 = pneg %p51
        %s195 = smul.u32 16, %s23
        %p196 = scmp.lt.s32.totalorder %s195, 47
        %s197 = scalar_select %p196, %s195, 47
        %s198 = smul.addr %s197, 8
        %s199 = scalar_lea.vmem %s1, %s198
        %p200 = pneg %p80
        %p201 = pneg %p77
        %p202 = pneg %p106
        %p203 = pneg %p103
        %s204 = sand.u32 %s93, 1
        %s205 = scalar_lea.sflag [#allocation7], %s204
        %s206 = sand.u32 %s93, 1
        %s207 = scalar_lea.vmem [#allocation8], %s206
        %s208 = smul.u32 16, %s23
        %s209 = smul.u32 2, %s24
        %s210 = ssub.s32 40, %s208
        %p211 = scmp.lt.s32.totalorder %s210, 16
        %s212 = scalar_select %p211, %s210, 16
        %s213 = smul.u32 8, %s212
        %s214 = ssub.s32 3, %s209
        %p215 = scmp.lt.s32.totalorder %s214, 2
        %s216 = scalar_select %p215, %s214, 2
        %s217 = smul.u32 %s213, %s216
        %s218 = smul.u32 16, %s23
        %p219 = scmp.lt.s32.totalorder %s218, 47
        %s220 = scalar_select %p219, %s218, 47
        %s221 = smul.addr %s220, 8
        %s222 = scalar_lea.vmem %s1, %s221
        %s223 = smul.u32 16, %s23
        %p224 = scmp.eq.s32.totalorder %s24, 0
        // Predicated region
        $region33: #{tpu_custom_call.1} parent=27 // pred_check
          %p225 = pneg %p224
        $region34: #{tpu_custom_call.1} parent=27 // pred_check_branch
          %227 = sbr.rel (%p225) target = $region36
        $region35: #{tpu_custom_call.1} parent=27 // pred_region
          %vm228 = vcmask 7168
          %229 = vst.msk [vmem:[#allocation2] sm:$0xff] %vm228, -inf
          %230 = vst.msk [vmem:[#allocation2 + $0x8] sm:$0xff] %vm228, -inf
          %231 = vst.msk [vmem:[#allocation2 + $0x10] sm:$0xff] %vm228, -inf
          %232 = vst.msk [vmem:[#allocation2 + $0x18] sm:$0xff] %vm228, -inf
          %233 = vst.msk [vmem:[#allocation2 + $0x20] sm:$0xff] %vm228, -inf
          %234 = vst.msk [vmem:[#allocation2 + $0x28] sm:$0xff] %vm228, -inf
          %235 = vst.msk [vmem:[#allocation2 + $0x30] sm:$0xff] %vm228, -inf
          %236 = vst.msk [vmem:[#allocation2 + $0x38] sm:$0xff] %vm228, -inf
          %237 = vst.msk [vmem:[#allocation2 + $0x40] sm:$0xff] %vm228, -inf
          %238 = vst.msk [vmem:[#allocation2 + $0x48] sm:$0xff] %vm228, -inf
          %239 = vst.msk [vmem:[#allocation2 + $0x50] sm:$0xff] %vm228, -inf
          %240 = vst.msk [vmem:[#allocation2 + $0x58] sm:$0xff] %vm228, -inf
          %241 = vst.msk [vmem:[#allocation2 + $0x60] sm:$0xff] %vm228, -inf
          %242 = vst.msk [vmem:[#allocation2 + $0x68] sm:$0xff] %vm228, -inf
          %243 = vst.msk [vmem:[#allocation2 + $0x70] sm:$0xff] %vm228, -inf
          %244 = vst.msk [vmem:[#allocation2 + $0x78] sm:$0xff] %vm228, -inf
          %245 = vst.msk [vmem:[#allocation3] sm:$0xff] %vm228, 0.0
          %246 = vst.msk [vmem:[#allocation3 + $0x8] sm:$0xff] %vm228, 0.0
          %247 = vst.msk [vmem:[#allocation3 + $0x10] sm:$0xff] %vm228, 0.0
          %248 = vst.msk [vmem:[#allocation3 + $0x18] sm:$0xff] %vm228, 0.0
          %249 = vst.msk [vmem:[#allocation3 + $0x20] sm:$0xff] %vm228, 0.0
          %250 = vst.msk [vmem:[#allocation3 + $0x28] sm:$0xff] %vm228, 0.0
          %251 = vst.msk [vmem:[#allocation3 + $0x30] sm:$0xff] %vm228, 0.0
          %252 = vst.msk [vmem:[#allocation3 + $0x38] sm:$0xff] %vm228, 0.0
          %253 = vst.msk [vmem:[#allocation3 + $0x40] sm:$0xff] %vm228, 0.0
          %254 = vst.msk [vmem:[#allocation3 + $0x48] sm:$0xff] %vm228, 0.0
          %255 = vst.msk [vmem:[#allocation3 + $0x50] sm:$0xff] %vm228, 0.0
          %256 = vst.msk [vmem:[#allocation3 + $0x58] sm:$0xff] %vm228, 0.0
          %257 = vst.msk [vmem:[#allocation3 + $0x60] sm:$0xff] %vm228, 0.0
          %258 = vst.msk [vmem:[#allocation3 + $0x68] sm:$0xff] %vm228, 0.0
          %259 = vst.msk [vmem:[#allocation3 + $0x70] sm:$0xff] %vm228, 0.0
          %260 = vst.msk [vmem:[#allocation3 + $0x78] sm:$0xff] %vm228, 0.0
          %261 = vst.msk [vmem:[#allocation4] sm:$0xff] %vm228, 0.0
          %262 = vst.msk [vmem:[#allocation4 + $0x8] sm:$0xff] %vm228, 0.0
          %263 = vst.msk [vmem:[#allocation4 + $0x10] sm:$0xff] %vm228, 0.0
          %264 = vst.msk [vmem:[#allocation4 + $0x18] sm:$0xff] %vm228, 0.0
          %265 = vst.msk [vmem:[#allocation4 + $0x20] sm:$0xff] %vm228, 0.0
          %266 = vst.msk [vmem:[#allocation4 + $0x28] sm:$0xff] %vm228, 0.0
          %267 = vst.msk [vmem:[#allocation4 + $0x30] sm:$0xff] %vm228, 0.0
          %268 = vst.msk [vmem:[#allocation4 + $0x38] sm:$0xff] %vm228, 0.0
          %269 = vst.msk [vmem:[#allocation4 + $0x40] sm:$0xff] %vm228, 0.0
          %270 = vst.msk [vmem:[#allocation4 + $0x48] sm:$0xff] %vm228, 0.0
          %271 = vst.msk [vmem:[#allocation4 + $0x50] sm:$0xff] %vm228, 0.0
          %272 = vst.msk [vmem:[#allocation4 + $0x58] sm:$0xff] %vm228, 0.0
          %273 = vst.msk [vmem:[#allocation4 + $0x60] sm:$0xff] %vm228, 0.0
          %274 = vst.msk [vmem:[#allocation4 + $0x68] sm:$0xff] %vm228, 0.0
          %275 = vst.msk [vmem:[#allocation4 + $0x70] sm:$0xff] %vm228, 0.0
          %276 = vst.msk [vmem:[#allocation4 + $0x78] sm:$0xff] %vm228, 0.0
        $region36: #{tpu_custom_call.1} parent=27 // pred_fallthru
          _
        %v277 = vld [vmem:[%s182] sm:$0xff]
        %v278 = vld [vmem:[%s182 + $0x8] sm:$0xff]
        %v279 = vld [vmem:[%s182 + $0x10] sm:$0xff]
        %v280 = vld [vmem:[%s182 + $0x18] sm:$0xff]
        %v281 = vld [vmem:[%s182 + $0x20] sm:$0xff]
        %v282 = vld [vmem:[%s182 + $0x28] sm:$0xff]
        %v283 = vld [vmem:[%s182 + $0x30] sm:$0xff]
        %v284 = vld [vmem:[%s182 + $0x38] sm:$0xff]
        %v285 = vld [vmem:[%s182 + $0x40] sm:$0xff]
        %v286 = vld [vmem:[%s182 + $0x48] sm:$0xff]
        %v287 = vld [vmem:[%s182 + $0x50] sm:$0xff]
        %v288 = vld [vmem:[%s182 + $0x58] sm:$0xff]
        %v289 = vld [vmem:[%s182 + $0x60] sm:$0xff]
        %v290 = vld [vmem:[%s182 + $0x68] sm:$0xff]
        %v291 = vld [vmem:[%s182 + $0x70] sm:$0xff]
        %v292 = vld [vmem:[%s182 + $0x78] sm:$0xff]
        %v293 = vld [vmem:[%s182 + $0x80] sm:$0xff]
        %v294 = vld [vmem:[%s182 + $0x88] sm:$0xff]
        %v295 = vld [vmem:[%s182 + $0x90] sm:$0xff]
        %v296 = vld [vmem:[%s182 + $0x98] sm:$0xff]
        %v297 = vld [vmem:[%s182 + $0xa0] sm:$0xff]
        %v298 = vld [vmem:[%s182 + $0xa8] sm:$0xff]
        %v299 = vld [vmem:[%s182 + $0xb0] sm:$0xff]
        %v300 = vld [vmem:[%s182 + $0xb8] sm:$0xff]
        %v301 = vld [vmem:[%s182 + $0xc0] sm:$0xff]
        %v302 = vld [vmem:[%s182 + $0xc8] sm:$0xff]
        %v303 = vld [vmem:[%s182 + $0xd0] sm:$0xff]
        %v304 = vld [vmem:[%s182 + $0xd8] sm:$0xff]
        %v305 = vld [vmem:[%s182 + $0xe0] sm:$0xff]
        %v306 = vld [vmem:[%s182 + $0xe8] sm:$0xff]
        %v307 = vld [vmem:[%s182 + $0xf0] sm:$0xff]
        %v308 = vld [vmem:[%s182 + $0xf8] sm:$0xff]
        %v309 = vld [vmem:[%s222] sm:$0xff]
        %v310 = vld [vmem:[%s222 + $0x8] sm:$0xff]
        %v311 = vld [vmem:[%s222 + $0x10] sm:$0xff]
        %v312 = vld [vmem:[%s222 + $0x18] sm:$0xff]
        %v313 = vld [vmem:[%s222 + $0x20] sm:$0xff]
        %v314 = vld [vmem:[%s222 + $0x28] sm:$0xff]
        %v315 = vld [vmem:[%s222 + $0x30] sm:$0xff]
        %v316 = vld [vmem:[%s222 + $0x38] sm:$0xff]
        %v317 = vld [vmem:[%s222 + $0x40] sm:$0xff]
        %v318 = vld [vmem:[%s222 + $0x48] sm:$0xff]
        %v319 = vld [vmem:[%s222 + $0x50] sm:$0xff]
        %v320 = vld [vmem:[%s222 + $0x58] sm:$0xff]
        %v321 = vld [vmem:[%s222 + $0x60] sm:$0xff]
        %v322 = vld [vmem:[%s222 + $0x68] sm:$0xff]
        %v323 = vld [vmem:[%s222 + $0x70] sm:$0xff]
        %v324 = vld [vmem:[%s222 + $0x78] sm:$0xff]
        %s325 = smul.u32 %s24, 256
        %v326 = vlaneseq
        %v327 = vand.u32 %v326, 127
        %v328 = vadd.s32 %v327, 128
        %v329 = vstv %s325
        %v330 = vadd.s32 %v329, %v327
        %v331 = vadd.s32 %v329, %v328
        %vm332 = vcmp.lt.s32.totalorder %v330, 384
        %vm333 = vcmp.lt.s32.totalorder %v331, 384
        %v334 = vsel %vm332, %v277, -inf
        %v335 = vsel %vm333, %v278, -inf
        %v336 = vsel %vm332, %v279, -inf
        %v337 = vsel %vm333, %v280, -inf
        %v338 = vsel %vm332, %v281, -inf
        %v339 = vsel %vm333, %v282, -inf
        %v340 = vsel %vm332, %v283, -inf
        %v341 = vsel %vm333, %v284, -inf
        %v342 = vsel %vm332, %v285, -inf
        %v343 = vsel %vm333, %v286, -inf
        %v344 = vsel %vm332, %v287, -inf
        %v345 = vsel %vm333, %v288, -inf
        %v346 = vsel %vm332, %v289, -inf
        %v347 = vsel %vm333, %v290, -inf
        %v348 = vsel %vm332, %v291, -inf
        %v349 = vsel %vm333, %v292, -inf
        %v350 = vsel %vm332, %v293, -inf
        %v351 = vsel %vm333, %v294, -inf
        %v352 = vsel %vm332, %v295, -inf
        %v353 = vsel %vm333, %v296, -inf
        %v354 = vsel %vm332, %v297, -inf
        %v355 = vsel %vm333, %v298, -inf
        %v356 = vsel %vm332, %v299, -inf
        %v357 = vsel %vm333, %v300, -inf
        %v358 = vsel %vm332, %v301, -inf
        %v359 = vsel %vm333, %v302, -inf
        %v360 = vsel %vm332, %v303, -inf
        %v361 = vsel %vm333, %v304, -inf
        %v362 = vsel %vm332, %v305, -inf
        %v363 = vsel %vm333, %v306, -inf
        %v364 = vsel %vm332, %v307, -inf
        %v365 = vsel %vm333, %v308, -inf
        %v366 = vld [vmem:[#allocation2] sm:$0xff]
        %v367 = vld [vmem:[#allocation2 + $0x8] sm:$0xff]
        %v368 = vld [vmem:[#allocation2 + $0x10] sm:$0xff]
        %v369 = vld [vmem:[#allocation2 + $0x18] sm:$0xff]
        %v370 = vld [vmem:[#allocation2 + $0x20] sm:$0xff]
        %v371 = vld [vmem:[#allocation2 + $0x28] sm:$0xff]
        %v372 = vld [vmem:[#allocation2 + $0x30] sm:$0xff]
        %v373 = vld [vmem:[#allocation2 + $0x38] sm:$0xff]
        %v374 = vld [vmem:[#allocation2 + $0x40] sm:$0xff]
        %v375 = vld [vmem:[#allocation2 + $0x48] sm:$0xff]
        %v376 = vld [vmem:[#allocation2 + $0x50] sm:$0xff]
        %v377 = vld [vmem:[#allocation2 + $0x58] sm:$0xff]
        %v378 = vld [vmem:[#allocation2 + $0x60] sm:$0xff]
        %v379 = vld [vmem:[#allocation2 + $0x68] sm:$0xff]
        %v380 = vld [vmem:[#allocation2 + $0x70] sm:$0xff]
        %v381 = vld [vmem:[#allocation2 + $0x78] sm:$0xff]
        %v382 = vmax.f32 %v334, %v335
        %383 = vmax.xlane.f32.xlu0 %v382
        %v384 = vpop.xlane.xlu0 %383
        %v385 = vmax.f32 %v336, %v337
        %386 = vmax.xlane.f32.xlu0 %v385
        %v387 = vpop.xlane.xlu0 %386
        %v388 = vmax.f32 %v338, %v339
        %389 = vmax.xlane.f32.xlu0 %v388
        %v390 = vpop.xlane.xlu0 %389
        %v391 = vmax.f32 %v340, %v341
        %392 = vmax.xlane.f32.xlu0 %v391
        %v393 = vpop.xlane.xlu0 %392
        %v394 = vmax.f32 %v342, %v343
        %395 = vmax.xlane.f32.xlu0 %v394
        %v396 = vpop.xlane.xlu0 %395
        %v397 = vmax.f32 %v344, %v345
        %398 = vmax.xlane.f32.xlu0 %v397
        %v399 = vpop.xlane.xlu0 %398
        %v400 = vmax.f32 %v346, %v347
        %401 = vmax.xlane.f32.xlu0 %v400
        %v402 = vpop.xlane.xlu0 %401
        %v403 = vmax.f32 %v348, %v349
        %404 = vmax.xlane.f32.xlu0 %v403
        %v405 = vpop.xlane.xlu0 %404
        %v406 = vmax.f32 %v350, %v351
        %407 = vmax.xlane.f32.xlu0 %v406
        %v408 = vpop.xlane.xlu0 %407
        %v409 = vmax.f32 %v352, %v353
        %410 = vmax.xlane.f32.xlu0 %v409
        %v411 = vpop.xlane.xlu0 %410
        %v412 = vmax.f32 %v354, %v355
        %413 = vmax.xlane.f32.xlu0 %v412
        %v414 = vpop.xlane.xlu0 %413
        %v415 = vmax.f32 %v356, %v357
        %416 = vmax.xlane.f32.xlu0 %v415
        %v417 = vpop.xlane.xlu0 %416
        %v418 = vmax.f32 %v358, %v359
        %419 = vmax.xlane.f32.xlu0 %v418
        %v420 = vpop.xlane.xlu0 %419
        %v421 = vmax.f32 %v360, %v361
        %422 = vmax.xlane.f32.xlu0 %v421
        %v423 = vpop.xlane.xlu0 %422
        %v424 = vmax.f32 %v362, %v363
        %425 = vmax.xlane.f32.xlu0 %v424
        %v426 = vpop.xlane.xlu0 %425
        %v427 = vmax.f32 %v364, %v365
        %428 = vmax.xlane.f32.xlu0 %v427
        %v429 = vpop.xlane.xlu0 %428
        %v430 = vmax.f32 %v366, %v384
        %v431 = vmax.f32 %v367, %v387
        %v432 = vmax.f32 %v368, %v390
        %v433 = vmax.f32 %v369, %v393
        %v434 = vmax.f32 %v370, %v396
        %v435 = vmax.f32 %v371, %v399
        %v436 = vmax.f32 %v372, %v402
        %v437 = vmax.f32 %v373, %v405
        %v438 = vmax.f32 %v374, %v408
        %v439 = vmax.f32 %v375, %v411
        %v440 = vmax.f32 %v376, %v414
        %v441 = vmax.f32 %v377, %v417
        %v442 = vmax.f32 %v378, %v420
        %v443 = vmax.f32 %v379, %v423
        %v444 = vmax.f32 %v380, %v426
        %v445 = vmax.f32 %v381, %v429
        %v446 = vld [vmem:[#allocation3] sm:$0xff]
        %v447 = vld [vmem:[#allocation3 + $0x8] sm:$0xff]
        %v448 = vld [vmem:[#allocation3 + $0x10] sm:$0xff]
        %v449 = vld [vmem:[#allocation3 + $0x18] sm:$0xff]
        %v450 = vld [vmem:[#allocation3 + $0x20] sm:$0xff]
        %v451 = vld [vmem:[#allocation3 + $0x28] sm:$0xff]
        %v452 = vld [vmem:[#allocation3 + $0x30] sm:$0xff]
        %v453 = vld [vmem:[#allocation3 + $0x38] sm:$0xff]
        %v454 = vld [vmem:[#allocation3 + $0x40] sm:$0xff]
        %v455 = vld [vmem:[#allocation3 + $0x48] sm:$0xff]
        %v456 = vld [vmem:[#allocation3 + $0x50] sm:$0xff]
        %v457 = vld [vmem:[#allocation3 + $0x58] sm:$0xff]
        %v458 = vld [vmem:[#allocation3 + $0x60] sm:$0xff]
        %v459 = vld [vmem:[#allocation3 + $0x68] sm:$0xff]
        %v460 = vld [vmem:[#allocation3 + $0x70] sm:$0xff]
        %v461 = vld [vmem:[#allocation3 + $0x78] sm:$0xff]
        %v462 = vsub.f32 %v366, %v430
        %v463 = vsub.f32 %v367, %v431
        %v464 = vsub.f32 %v368, %v432
        %v465 = vsub.f32 %v369, %v433
        %v466 = vsub.f32 %v370, %v434
        %v467 = vsub.f32 %v371, %v435
        %v468 = vsub.f32 %v372, %v436
        %v469 = vsub.f32 %v373, %v437
        %v470 = vsub.f32 %v374, %v438
        %v471 = vsub.f32 %v375, %v439
        %v472 = vsub.f32 %v376, %v440
        %v473 = vsub.f32 %v377, %v441
        %v474 = vsub.f32 %v378, %v442
        %v475 = vsub.f32 %v379, %v443
        %v476 = vsub.f32 %v380, %v444
        %v477 = vsub.f32 %v381, %v445
        %v478 = vmul.f32 %v462, 1.442695
        %v479 = vpow.pop %v478
        %v480 = vmul.f32 %v463, 1.442695
        %v481 = vpow.pop %v480
        %v482 = vmul.f32 %v464, 1.442695
        %v483 = vpow.pop %v482
        %v484 = vmul.f32 %v465, 1.442695
        %v485 = vpow.pop %v484
        %v486 = vmul.f32 %v466, 1.442695
        %v487 = vpow.pop %v486
        %v488 = vmul.f32 %v467, 1.442695
        %v489 = vpow.pop %v488
        %v490 = vmul.f32 %v468, 1.442695
        %v491 = vpow.pop %v490
        %v492 = vmul.f32 %v469, 1.442695
        %v493 = vpow.pop %v492
        %v494 = vmul.f32 %v470, 1.442695
        %v495 = vpow.pop %v494
        %v496 = vmul.f32 %v471, 1.442695
        %v497 = vpow.pop %v496
        %v498 = vmul.f32 %v472, 1.442695
        %v499 = vpow.pop %v498
        %v500 = vmul.f32 %v473, 1.442695
        %v501 = vpow.pop %v500
        %v502 = vmul.f32 %v474, 1.442695
        %v503 = vpow.pop %v502
        %v504 = vmul.f32 %v475, 1.442695
        %v505 = vpow.pop %v504
        %v506 = vmul.f32 %v476, 1.442695
        %v507 = vpow.pop %v506
        %v508 = vmul.f32 %v477, 1.442695
        %v509 = vpow.pop %v508
        %v510 = vmul.f32 %v446, %v479
        %v511 = vmul.f32 %v447, %v481
        %v512 = vmul.f32 %v448, %v483
        %v513 = vmul.f32 %v449, %v485
        %v514 = vmul.f32 %v450, %v487
        %v515 = vmul.f32 %v451, %v489
        %v516 = vmul.f32 %v452, %v491
        %v517 = vmul.f32 %v453, %v493
        %v518 = vmul.f32 %v454, %v495
        %v519 = vmul.f32 %v455, %v497
        %v520 = vmul.f32 %v456, %v499
        %v521 = vmul.f32 %v457, %v501
        %v522 = vmul.f32 %v458, %v503
        %v523 = vmul.f32 %v459, %v505
        %v524 = vmul.f32 %v460, %v507
        %v525 = vmul.f32 %v461, %v509
        %527 = vset.pattern.permute.xlu0 0
        %528 = vperm.xlu0 %527, %v430
        %v529 = vpop.permute.xlu0 %528
        %532 = vset.pattern.permute.xlu0 0
        %533 = vperm.xlu0 %532, %v431
        %v534 = vpop.permute.xlu0 %533
        %537 = vset.pattern.permute.xlu0 0
        %538 = vperm.xlu0 %537, %v432
        %v539 = vpop.permute.xlu0 %538
        %542 = vset.pattern.permute.xlu0 0
        %543 = vperm.xlu0 %542, %v433
        %v544 = vpop.permute.xlu0 %543
        %547 = vset.pattern.permute.xlu0 0
        %548 = vperm.xlu0 %547, %v434
        %v549 = vpop.permute.xlu0 %548
        %552 = vset.pattern.permute.xlu0 0
        %553 = vperm.xlu0 %552, %v435
        %v554 = vpop.permute.xlu0 %553
        %557 = vset.pattern.permute.xlu0 0
        %558 = vperm.xlu0 %557, %v436
        %v559 = vpop.permute.xlu0 %558
        %562 = vset.pattern.permute.xlu0 0
        %563 = vperm.xlu0 %562, %v437
        %v564 = vpop.permute.xlu0 %563
        %567 = vset.pattern.permute.xlu0 0
        %568 = vperm.xlu0 %567, %v438
        %v569 = vpop.permute.xlu0 %568
        %572 = vset.pattern.permute.xlu0 0
        %573 = vperm.xlu0 %572, %v439
        %v574 = vpop.permute.xlu0 %573
        %577 = vset.pattern.permute.xlu0 0
        %578 = vperm.xlu0 %577, %v440
        %v579 = vpop.permute.xlu0 %578
        %582 = vset.pattern.permute.xlu0 0
        %583 = vperm.xlu0 %582, %v441
        %v584 = vpop.permute.xlu0 %583
        %587 = vset.pattern.permute.xlu0 0
        %588 = vperm.xlu0 %587, %v442
        %v589 = vpop.permute.xlu0 %588
        %592 = vset.pattern.permute.xlu0 0
        %593 = vperm.xlu0 %592, %v443
        %v594 = vpop.permute.xlu0 %593
        %597 = vset.pattern.permute.xlu0 0
        %598 = vperm.xlu0 %597, %v444
        %v599 = vpop.permute.xlu0 %598
        %602 = vset.pattern.permute.xlu0 0
        %603 = vperm.xlu0 %602, %v445
        %v604 = vpop.permute.xlu0 %603
        %v606 = vsub.f32 %v334, %v529
        %v607 = vsub.f32 %v335, %v529
        %v608 = vsub.f32 %v336, %v534
        %v609 = vsub.f32 %v337, %v534
        %v610 = vsub.f32 %v338, %v539
        %v611 = vsub.f32 %v339, %v539
        %v612 = vsub.f32 %v340, %v544
        %v613 = vsub.f32 %v341, %v544
        %v614 = vsub.f32 %v342, %v549
        %v615 = vsub.f32 %v343, %v549
        %v616 = vsub.f32 %v344, %v554
        %v617 = vsub.f32 %v345, %v554
        %v618 = vsub.f32 %v346, %v559
        %v619 = vsub.f32 %v347, %v559
        %v620 = vsub.f32 %v348, %v564
        %v621 = vsub.f32 %v349, %v564
        %v622 = vsub.f32 %v350, %v569
        %v623 = vsub.f32 %v351, %v569
        %v624 = vsub.f32 %v352, %v574
        %v625 = vsub.f32 %v353, %v574
        %v626 = vsub.f32 %v354, %v579
        %v627 = vsub.f32 %v355, %v579
        %v628 = vsub.f32 %v356, %v584
        %v629 = vsub.f32 %v357, %v584
        %v630 = vsub.f32 %v358, %v589
        %v631 = vsub.f32 %v359, %v589
        %v632 = vsub.f32 %v360, %v594
        %v633 = vsub.f32 %v361, %v594
        %v634 = vsub.f32 %v362, %v599
        %v635 = vsub.f32 %v363, %v599
        %v636 = vsub.f32 %v364, %v604
        %v637 = vsub.f32 %v365, %v604
        %v638 = vmul.f32 %v606, 1.442695
        %v639 = vpow.pop %v638
        %v640 = vmul.f32 %v607, 1.442695
        %v641 = vpow.pop %v640
        %v642 = vmul.f32 %v608, 1.442695
        %v643 = vpow.pop %v642
        %v644 = vmul.f32 %v609, 1.442695
        %v645 = vpow.pop %v644
        %v646 = vmul.f32 %v610, 1.442695
        %v647 = vpow.pop %v646
        %v648 = vmul.f32 %v611, 1.442695
        %v649 = vpow.pop %v648
        %v650 = vmul.f32 %v612, 1.442695
        %v651 = vpow.pop %v650
        %v652 = vmul.f32 %v613, 1.442695
        %v653 = vpow.pop %v652
        %v654 = vmul.f32 %v614, 1.442695
        %v655 = vpow.pop %v654
        %v656 = vmul.f32 %v615, 1.442695
        %v657 = vpow.pop %v656
        %v658 = vmul.f32 %v616, 1.442695
        %v659 = vpow.pop %v658
        %v660 = vmul.f32 %v617, 1.442695
        %v661 = vpow.pop %v660
        %v662 = vmul.f32 %v618, 1.442695
        %v663 = vpow.pop %v662
        %v664 = vmul.f32 %v619, 1.442695
        %v665 = vpow.pop %v664
        %v666 = vmul.f32 %v620, 1.442695
        %v667 = vpow.pop %v666
        %v668 = vmul.f32 %v621, 1.442695
        %v669 = vpow.pop %v668
        %v670 = vmul.f32 %v622, 1.442695
        %v671 = vpow.pop %v670
        %v672 = vmul.f32 %v623, 1.442695
        %v673 = vpow.pop %v672
        %v674 = vmul.f32 %v624, 1.442695
        %v675 = vpow.pop %v674
        %v676 = vmul.f32 %v625, 1.442695
        %v677 = vpow.pop %v676
        %v678 = vmul.f32 %v626, 1.442695
        %v679 = vpow.pop %v678
        %v680 = vmul.f32 %v627, 1.442695
        %v681 = vpow.pop %v680
        %v682 = vmul.f32 %v628, 1.442695
        %v683 = vpow.pop %v682
        %v684 = vmul.f32 %v629, 1.442695
        %v685 = vpow.pop %v684
        %v686 = vmul.f32 %v630, 1.442695
        %v687 = vpow.pop %v686
        %v688 = vmul.f32 %v631, 1.442695
        %v689 = vpow.pop %v688
        %v690 = vmul.f32 %v632, 1.442695
        %v691 = vpow.pop %v690
        %v692 = vmul.f32 %v633, 1.442695
        %v693 = vpow.pop %v692
        %v694 = vmul.f32 %v634, 1.442695
        %v695 = vpow.pop %v694
        %v696 = vmul.f32 %v635, 1.442695
        %v697 = vpow.pop %v696
        %v698 = vmul.f32 %v636, 1.442695
        %v699 = vpow.pop %v698
        %v700 = vmul.f32 %v637, 1.442695
        %v701 = vpow.pop %v700
        %v702 = vadd.f32 %v639, %v641
        %703 = vadd.xlane.f32.xlu0 %v702
        %v704 = vpop.xlane.xlu0 %703
        %v705 = vadd.f32 %v643, %v645
        %706 = vadd.xlane.f32.xlu0 %v705
        %v707 = vpop.xlane.xlu0 %706
        %v708 = vadd.f32 %v647, %v649
        %709 = vadd.xlane.f32.xlu0 %v708
        %v710 = vpop.xlane.xlu0 %709
        %v711 = vadd.f32 %v651, %v653
        %712 = vadd.xlane.f32.xlu0 %v711
        %v713 = vpop.xlane.xlu0 %712
        %v714 = vadd.f32 %v655, %v657
        %715 = vadd.xlane.f32.xlu0 %v714
        %v716 = vpop.xlane.xlu0 %715
        %v717 = vadd.f32 %v659, %v661
        %718 = vadd.xlane.f32.xlu0 %v717
        %v719 = vpop.xlane.xlu0 %718
        %v720 = vadd.f32 %v663, %v665
        %721 = vadd.xlane.f32.xlu0 %v720
        %v722 = vpop.xlane.xlu0 %721
        %v723 = vadd.f32 %v667, %v669
        %724 = vadd.xlane.f32.xlu0 %v723
        %v725 = vpop.xlane.xlu0 %724
        %v726 = vadd.f32 %v671, %v673
        %727 = vadd.xlane.f32.xlu0 %v726
        %v728 = vpop.xlane.xlu0 %727
        %v729 = vadd.f32 %v675, %v677
        %730 = vadd.xlane.f32.xlu0 %v729
        %v731 = vpop.xlane.xlu0 %730
        %v732 = vadd.f32 %v679, %v681
        %733 = vadd.xlane.f32.xlu0 %v732
        %v734 = vpop.xlane.xlu0 %733
        %v735 = vadd.f32 %v683, %v685
        %736 = vadd.xlane.f32.xlu0 %v735
        %v737 = vpop.xlane.xlu0 %736
        %v738 = vadd.f32 %v687, %v689
        %739 = vadd.xlane.f32.xlu0 %v738
        %v740 = vpop.xlane.xlu0 %739
        %v741 = vadd.f32 %v691, %v693
        %742 = vadd.xlane.f32.xlu0 %v741
        %v743 = vpop.xlane.xlu0 %742
        %v744 = vadd.f32 %v695, %v697
        %745 = vadd.xlane.f32.xlu0 %v744
        %v746 = vpop.xlane.xlu0 %745
        %v747 = vadd.f32 %v699, %v701
        %748 = vadd.xlane.f32.xlu0 %v747
        %v749 = vpop.xlane.xlu0 %748
        %v750 = vadd.f32 %v510, %v704
        %v751 = vadd.f32 %v511, %v707
        %v752 = vadd.f32 %v512, %v710
        %v753 = vadd.f32 %v513, %v713
        %v754 = vadd.f32 %v514, %v716
        %v755 = vadd.f32 %v515, %v719
        %v756 = vadd.f32 %v516, %v722
        %v757 = vadd.f32 %v517, %v725
        %v758 = vadd.f32 %v518, %v728
        %v759 = vadd.f32 %v519, %v731
        %v760 = vadd.f32 %v520, %v734
        %v761 = vadd.f32 %v521, %v737
        %v762 = vadd.f32 %v522, %v740
        %v763 = vadd.f32 %v523, %v743
        %v764 = vadd.f32 %v524, %v746
        %v765 = vadd.f32 %v525, %v749
        %vm766 = vcmask 7168
        %767 = vst.msk [vmem:[#allocation3] sm:$0xff] %vm766, %v750
        %768 = vst.msk [vmem:[#allocation3 + $0x8] sm:$0xff] %vm766, %v751
        %769 = vst.msk [vmem:[#allocation3 + $0x10] sm:$0xff] %vm766, %v752
        %770 = vst.msk [vmem:[#allocation3 + $0x18] sm:$0xff] %vm766, %v753
        %771 = vst.msk [vmem:[#allocation3 + $0x20] sm:$0xff] %vm766, %v754
        %772 = vst.msk [vmem:[#allocation3 + $0x28] sm:$0xff] %vm766, %v755
        %773 = vst.msk [vmem:[#allocation3 + $0x30] sm:$0xff] %vm766, %v756
        %774 = vst.msk [vmem:[#allocation3 + $0x38] sm:$0xff] %vm766, %v757
        %775 = vst.msk [vmem:[#allocation3 + $0x40] sm:$0xff] %vm766, %v758
        %776 = vst.msk [vmem:[#allocation3 + $0x48] sm:$0xff] %vm766, %v759
        %777 = vst.msk [vmem:[#allocation3 + $0x50] sm:$0xff] %vm766, %v760
        %778 = vst.msk [vmem:[#allocation3 + $0x58] sm:$0xff] %vm766, %v761
        %779 = vst.msk [vmem:[#allocation3 + $0x60] sm:$0xff] %vm766, %v762
        %780 = vst.msk [vmem:[#allocation3 + $0x68] sm:$0xff] %vm766, %v763
        %781 = vst.msk [vmem:[#allocation3 + $0x70] sm:$0xff] %vm766, %v764
        %782 = vst.msk [vmem:[#allocation3 + $0x78] sm:$0xff] %vm766, %v765
        %v783 = vld [vmem:[#allocation4] sm:$0xff]
        %v784 = vld [vmem:[#allocation4 + $0x8] sm:$0xff]
        %v785 = vld [vmem:[#allocation4 + $0x10] sm:$0xff]
        %v786 = vld [vmem:[#allocation4 + $0x18] sm:$0xff]
        %v787 = vld [vmem:[#allocation4 + $0x20] sm:$0xff]
        %v788 = vld [vmem:[#allocation4 + $0x28] sm:$0xff]
        %v789 = vld [vmem:[#allocation4 + $0x30] sm:$0xff]
        %v790 = vld [vmem:[#allocation4 + $0x38] sm:$0xff]
        %v791 = vld [vmem:[#allocation4 + $0x40] sm:$0xff]
        %v792 = vld [vmem:[#allocation4 + $0x48] sm:$0xff]
        %v793 = vld [vmem:[#allocation4 + $0x50] sm:$0xff]
        %v794 = vld [vmem:[#allocation4 + $0x58] sm:$0xff]
        %v795 = vld [vmem:[#allocation4 + $0x60] sm:$0xff]
        %v796 = vld [vmem:[#allocation4 + $0x68] sm:$0xff]
        %v797 = vld [vmem:[#allocation4 + $0x70] sm:$0xff]
        %v798 = vld [vmem:[#allocation4 + $0x78] sm:$0xff]
        %799 = vset.pattern.permute.xlu0 0
        %800 = vperm.xlu0 %799, %v309
        %v801 = vpop.permute.xlu0 %800
        %802 = vset.pattern.permute.xlu0 0
        %803 = vperm.xlu0 %802, %v310
        %v804 = vpop.permute.xlu0 %803
        %805 = vset.pattern.permute.xlu0 0
        %806 = vperm.xlu0 %805, %v311
        %v807 = vpop.permute.xlu0 %806
        %808 = vset.pattern.permute.xlu0 0
        %809 = vperm.xlu0 %808, %v312
        %v810 = vpop.permute.xlu0 %809
        %811 = vset.pattern.permute.xlu0 0
        %812 = vperm.xlu0 %811, %v313
        %v813 = vpop.permute.xlu0 %812
        %814 = vset.pattern.permute.xlu0 0
        %815 = vperm.xlu0 %814, %v314
        %v816 = vpop.permute.xlu0 %815
        %817 = vset.pattern.permute.xlu0 0
        %818 = vperm.xlu0 %817, %v315
        %v819 = vpop.permute.xlu0 %818
        %820 = vset.pattern.permute.xlu0 0
        %821 = vperm.xlu0 %820, %v316
        %v822 = vpop.permute.xlu0 %821
        %823 = vset.pattern.permute.xlu0 0
        %824 = vperm.xlu0 %823, %v317
        %v825 = vpop.permute.xlu0 %824
        %826 = vset.pattern.permute.xlu0 0
        %827 = vperm.xlu0 %826, %v318
        %v828 = vpop.permute.xlu0 %827
        %829 = vset.pattern.permute.xlu0 0
        %830 = vperm.xlu0 %829, %v319
        %v831 = vpop.permute.xlu0 %830
        %832 = vset.pattern.permute.xlu0 0
        %833 = vperm.xlu0 %832, %v320
        %v834 = vpop.permute.xlu0 %833
        %835 = vset.pattern.permute.xlu0 0
        %836 = vperm.xlu0 %835, %v321
        %v837 = vpop.permute.xlu0 %836
        %838 = vset.pattern.permute.xlu0 0
        %839 = vperm.xlu0 %838, %v322
        %v840 = vpop.permute.xlu0 %839
        %841 = vset.pattern.permute.xlu0 0
        %842 = vperm.xlu0 %841, %v323
        %v843 = vpop.permute.xlu0 %842
        %844 = vset.pattern.permute.xlu0 0
        %845 = vperm.xlu0 %844, %v324
        %v846 = vpop.permute.xlu0 %845
        %vm847 = vcmp.eq.s32.totalorder %v330, %v801
        %vm848 = vcmp.eq.s32.totalorder %v331, %v801
        %vm849 = vcmp.eq.s32.totalorder %v330, %v804
        %vm850 = vcmp.eq.s32.totalorder %v331, %v804
        %vm851 = vcmp.eq.s32.totalorder %v330, %v807
        %vm852 = vcmp.eq.s32.totalorder %v331, %v807
        %vm853 = vcmp.eq.s32.totalorder %v330, %v810
        %vm854 = vcmp.eq.s32.totalorder %v331, %v810
        %vm855 = vcmp.eq.s32.totalorder %v330, %v813
        %vm856 = vcmp.eq.s32.totalorder %v331, %v813
        %vm857 = vcmp.eq.s32.totalorder %v330, %v816
        %vm858 = vcmp.eq.s32.totalorder %v331, %v816
        %vm859 = vcmp.eq.s32.totalorder %v330, %v819
        %vm860 = vcmp.eq.s32.totalorder %v331, %v819
        %vm861 = vcmp.eq.s32.totalorder %v330, %v822
        %vm862 = vcmp.eq.s32.totalorder %v331, %v822
        %vm863 = vcmp.eq.s32.totalorder %v330, %v825
        %vm864 = vcmp.eq.s32.totalorder %v331, %v825
        %vm865 = vcmp.eq.s32.totalorder %v330, %v828
        %vm866 = vcmp.eq.s32.totalorder %v331, %v828
        %vm867 = vcmp.eq.s32.totalorder %v330, %v831
        %vm868 = vcmp.eq.s32.totalorder %v331, %v831
        %vm869 = vcmp.eq.s32.totalorder %v330, %v834
        %vm870 = vcmp.eq.s32.totalorder %v331, %v834
        %vm871 = vcmp.eq.s32.totalorder %v330, %v837
        %vm872 = vcmp.eq.s32.totalorder %v331, %v837
        %vm873 = vcmp.eq.s32.totalorder %v330, %v840
        %vm874 = vcmp.eq.s32.totalorder %v331, %v840
        %vm875 = vcmp.eq.s32.totalorder %v330, %v843
        %vm876 = vcmp.eq.s32.totalorder %v331, %v843
        %vm877 = vcmp.eq.s32.totalorder %v330, %v846
        %vm878 = vcmp.eq.s32.totalorder %v331, %v846
        %v879 = vsel %vm847, %v334, 0.0
        %v880 = vsel %vm848, %v335, 0.0
        %v881 = vsel %vm849, %v336, 0.0
        %v882 = vsel %vm850, %v337, 0.0
        %v883 = vsel %vm851, %v338, 0.0
        %v884 = vsel %vm852, %v339, 0.0
        %v885 = vsel %vm853, %v340, 0.0
        %v886 = vsel %vm854, %v341, 0.0
        %v887 = vsel %vm855, %v342, 0.0
        %v888 = vsel %vm856, %v343, 0.0
        %v889 = vsel %vm857, %v344, 0.0
        %v890 = vsel %vm858, %v345, 0.0
        %v891 = vsel %vm859, %v346, 0.0
        %v892 = vsel %vm860, %v347, 0.0
        %v893 = vsel %vm861, %v348, 0.0
        %v894 = vsel %vm862, %v349, 0.0
        %v895 = vsel %vm863, %v350, 0.0
        %v896 = vsel %vm864, %v351, 0.0
        %v897 = vsel %vm865, %v352, 0.0
        %v898 = vsel %vm866, %v353, 0.0
        %v899 = vsel %vm867, %v354, 0.0
        %v900 = vsel %vm868, %v355, 0.0
        %v901 = vsel %vm869, %v356, 0.0
        %v902 = vsel %vm870, %v357, 0.0
        %v903 = vsel %vm871, %v358, 0.0
        %v904 = vsel %vm872, %v359, 0.0
        %v905 = vsel %vm873, %v360, 0.0
        %v906 = vsel %vm874, %v361, 0.0
        %v907 = vsel %vm875, %v362, 0.0
        %v908 = vsel %vm876, %v363, 0.0
        %v909 = vsel %vm877, %v364, 0.0
        %v910 = vsel %vm878, %v365, 0.0
        %v911 = vadd.f32 %v879, %v880
        %912 = vadd.xlane.f32.xlu0 %v911
        %v913 = vpop.xlane.xlu0 %912
        %v914 = vadd.f32 %v881, %v882
        %915 = vadd.xlane.f32.xlu0 %v914
        %v916 = vpop.xlane.xlu0 %915
        %v917 = vadd.f32 %v883, %v884
        %918 = vadd.xlane.f32.xlu0 %v917
        %v919 = vpop.xlane.xlu0 %918
        %v920 = vadd.f32 %v885, %v886
        %921 = vadd.xlane.f32.xlu0 %v920
        %v922 = vpop.xlane.xlu0 %921
        %v923 = vadd.f32 %v887, %v888
        %924 = vadd.xlane.f32.xlu0 %v923
        %v925 = vpop.xlane.xlu0 %924
        %v926 = vadd.f32 %v889, %v890
        %927 = vadd.xlane.f32.xlu0 %v926
        %v928 = vpop.xlane.xlu0 %927
        %v929 = vadd.f32 %v891, %v892
        %930 = vadd.xlane.f32.xlu0 %v929
        %v931 = vpop.xlane.xlu0 %930
        %v932 = vadd.f32 %v893, %v894
        %933 = vadd.xlane.f32.xlu0 %v932
        %v934 = vpop.xlane.xlu0 %933
        %v935 = vadd.f32 %v895, %v896
        %936 = vadd.xlane.f32.xlu0 %v935
        %v937 = vpop.xlane.xlu0 %936
        %v938 = vadd.f32 %v897, %v898
        %939 = vadd.xlane.f32.xlu0 %v938
        %v940 = vpop.xlane.xlu0 %939
        %v941 = vadd.f32 %v899, %v900
        %942 = vadd.xlane.f32.xlu0 %v941
        %v943 = vpop.xlane.xlu0 %942
        %v944 = vadd.f32 %v901, %v902
        %945 = vadd.xlane.f32.xlu0 %v944
        %v946 = vpop.xlane.xlu0 %945
        %v947 = vadd.f32 %v903, %v904
        %948 = vadd.xlane.f32.xlu0 %v947
        %v949 = vpop.xlane.xlu0 %948
        %v950 = vadd.f32 %v905, %v906
        %951 = vadd.xlane.f32.xlu0 %v950
        %v952 = vpop.xlane.xlu0 %951
        %v953 = vadd.f32 %v907, %v908
        %954 = vadd.xlane.f32.xlu0 %v953
        %v955 = vpop.xlane.xlu0 %954
        %v956 = vadd.f32 %v909, %v910
        %957 = vadd.xlane.f32.xlu0 %v956
        %v958 = vpop.xlane.xlu0 %957
        %v959 = vadd.f32 %v783, %v913
        %v960 = vadd.f32 %v784, %v916
        %v961 = vadd.f32 %v785, %v919
        %v962 = vadd.f32 %v786, %v922
        %v963 = vadd.f32 %v787, %v925
        %v964 = vadd.f32 %v788, %v928
        %v965 = vadd.f32 %v789, %v931
        %v966 = vadd.f32 %v790, %v934
        %v967 = vadd.f32 %v791, %v937
        %v968 = vadd.f32 %v792, %v940
        %v969 = vadd.f32 %v793, %v943
        %v970 = vadd.f32 %v794, %v946
        %v971 = vadd.f32 %v795, %v949
        %v972 = vadd.f32 %v796, %v952
        %v973 = vadd.f32 %v797, %v955
        %v974 = vadd.f32 %v798, %v958
        %975 = vst.msk [vmem:[#allocation4] sm:$0xff] %vm766, %v959
        %976 = vst.msk [vmem:[#allocation4 + $0x8] sm:$0xff] %vm766, %v960
        %977 = vst.msk [vmem:[#allocation4 + $0x10] sm:$0xff] %vm766, %v961
        %978 = vst.msk [vmem:[#allocation4 + $0x18] sm:$0xff] %vm766, %v962
        %979 = vst.msk [vmem:[#allocation4 + $0x20] sm:$0xff] %vm766, %v963
        %980 = vst.msk [vmem:[#allocation4 + $0x28] sm:$0xff] %vm766, %v964
        %981 = vst.msk [vmem:[#allocation4 + $0x30] sm:$0xff] %vm766, %v965
        %982 = vst.msk [vmem:[#allocation4 + $0x38] sm:$0xff] %vm766, %v966
        %983 = vst.msk [vmem:[#allocation4 + $0x40] sm:$0xff] %vm766, %v967
        %984 = vst.msk [vmem:[#allocation4 + $0x48] sm:$0xff] %vm766, %v968
        %985 = vst.msk [vmem:[#allocation4 + $0x50] sm:$0xff] %vm766, %v969
        %986 = vst.msk [vmem:[#allocation4 + $0x58] sm:$0xff] %vm766, %v970
        %987 = vst.msk [vmem:[#allocation4 + $0x60] sm:$0xff] %vm766, %v971
        %988 = vst.msk [vmem:[#allocation4 + $0x68] sm:$0xff] %vm766, %v972
        %989 = vst.msk [vmem:[#allocation4 + $0x70] sm:$0xff] %vm766, %v973
        %990 = vst.msk [vmem:[#allocation4 + $0x78] sm:$0xff] %vm766, %v974
        %991 = vst.msk [vmem:[#allocation2] sm:$0xff] %vm766, %v430
        %992 = vst.msk [vmem:[#allocation2 + $0x8] sm:$0xff] %vm766, %v431
        %993 = vst.msk [vmem:[#allocation2 + $0x10] sm:$0xff] %vm766, %v432
        %994 = vst.msk [vmem:[#allocation2 + $0x18] sm:$0xff] %vm766, %v433
        %995 = vst.msk [vmem:[#allocation2 + $0x20] sm:$0xff] %vm766, %v434
        %996 = vst.msk [vmem:[#allocation2 + $0x28] sm:$0xff] %vm766, %v435
        %997 = vst.msk [vmem:[#allocation2 + $0x30] sm:$0xff] %vm766, %v436
        %998 = vst.msk [vmem:[#allocation2 + $0x38] sm:$0xff] %vm766, %v437
        %999 = vst.msk [vmem:[#allocation2 + $0x40] sm:$0xff] %vm766, %v438
        %1000 = vst.msk [vmem:[#allocation2 + $0x48] sm:$0xff] %vm766, %v439
        %1001 = vst.msk [vmem:[#allocation2 + $0x50] sm:$0xff] %vm766, %v440
        %1002 = vst.msk [vmem:[#allocation2 + $0x58] sm:$0xff] %vm766, %v441
        %1003 = vst.msk [vmem:[#allocation2 + $0x60] sm:$0xff] %vm766, %v442
        %1004 = vst.msk [vmem:[#allocation2 + $0x68] sm:$0xff] %vm766, %v443
        %1005 = vst.msk [vmem:[#allocation2 + $0x70] sm:$0xff] %vm766, %v444
        %1006 = vst.msk [vmem:[#allocation2 + $0x78] sm:$0xff] %vm766, %v445
        %p1007 = scmp.eq.s32.totalorder %s24, 1
        // Predicated region
        $region37: #{tpu_custom_call.1} parent=27 // pred_check
          %p1008 = pneg %p1007
        $region38: #{tpu_custom_call.1} parent=27 // pred_check_branch
          %1010 = sbr.rel (%p1008) target = $region40
        $region39: #{tpu_custom_call.1} parent=27 // pred_region
          %v1011 = vld [vmem:[#allocation2] sm:$0xff]
          %v1012 = vld [vmem:[#allocation2 + $0x8] sm:$0xff]
          %v1013 = vld [vmem:[#allocation2 + $0x10] sm:$0xff]
          %v1014 = vld [vmem:[#allocation2 + $0x18] sm:$0xff]
          %v1015 = vld [vmem:[#allocation2 + $0x20] sm:$0xff]
          %v1016 = vld [vmem:[#allocation2 + $0x28] sm:$0xff]
          %v1017 = vld [vmem:[#allocation2 + $0x30] sm:$0xff]
          %v1018 = vld [vmem:[#allocation2 + $0x38] sm:$0xff]
          %v1019 = vld [vmem:[#allocation2 + $0x40] sm:$0xff]
          %v1020 = vld [vmem:[#allocation2 + $0x48] sm:$0xff]
          %v1021 = vld [vmem:[#allocation2 + $0x50] sm:$0xff]
          %v1022 = vld [vmem:[#allocation2 + $0x58] sm:$0xff]
          %v1023 = vld [vmem:[#allocation2 + $0x60] sm:$0xff]
          %v1024 = vld [vmem:[#allocation2 + $0x68] sm:$0xff]
          %v1025 = vld [vmem:[#allocation2 + $0x70] sm:$0xff]
          %v1026 = vld [vmem:[#allocation2 + $0x78] sm:$0xff]
          %v1027 = vld [vmem:[#allocation3] sm:$0xff]
          %v1028 = vld [vmem:[#allocation3 + $0x8] sm:$0xff]
          %v1029 = vld [vmem:[#allocation3 + $0x10] sm:$0xff]
          %v1030 = vld [vmem:[#allocation3 + $0x18] sm:$0xff]
          %v1031 = vld [vmem:[#allocation3 + $0x20] sm:$0xff]
          %v1032 = vld [vmem:[#allocation3 + $0x28] sm:$0xff]
          %v1033 = vld [vmem:[#allocation3 + $0x30] sm:$0xff]
          %v1034 = vld [vmem:[#allocation3 + $0x38] sm:$0xff]
          %v1035 = vld [vmem:[#allocation3 + $0x40] sm:$0xff]
          %v1036 = vld [vmem:[#allocation3 + $0x48] sm:$0xff]
          %v1037 = vld [vmem:[#allocation3 + $0x50] sm:$0xff]
          %v1038 = vld [vmem:[#allocation3 + $0x58] sm:$0xff]
          %v1039 = vld [vmem:[#allocation3 + $0x60] sm:$0xff]
          %v1040 = vld [vmem:[#allocation3 + $0x68] sm:$0xff]
          %v1041 = vld [vmem:[#allocation3 + $0x70] sm:$0xff]
          %v1042 = vld [vmem:[#allocation3 + $0x78] sm:$0xff]
          %v1043 = vlog2.pop %v1027
          %v1044 = vmul.f32 %v1043, 0.6931472
          %v1045 = vlog2.pop %v1028
          %v1046 = vmul.f32 %v1045, 0.6931472
          %v1047 = vlog2.pop %v1029
          %v1048 = vmul.f32 %v1047, 0.6931472
          %v1049 = vlog2.pop %v1030
          %v1050 = vmul.f32 %v1049, 0.6931472
          %v1051 = vlog2.pop %v1031
          %v1052 = vmul.f32 %v1051, 0.6931472
          %v1053 = vlog2.pop %v1032
          %v1054 = vmul.f32 %v1053, 0.6931472
          %v1055 = vlog2.pop %v1033
          %v1056 = vmul.f32 %v1055, 0.6931472
          %v1057 = vlog2.pop %v1034
          %v1058 = vmul.f32 %v1057, 0.6931472
          %v1059 = vlog2.pop %v1035
          %v1060 = vmul.f32 %v1059, 0.6931472
          %v1061 = vlog2.pop %v1036
          %v1062 = vmul.f32 %v1061, 0.6931472
          %v1063 = vlog2.pop %v1037
          %v1064 = vmul.f32 %v1063, 0.6931472
          %v1065 = vlog2.pop %v1038
          %v1066 = vmul.f32 %v1065, 0.6931472
          %v1067 = vlog2.pop %v1039
          %v1068 = vmul.f32 %v1067, 0.6931472
          %v1069 = vlog2.pop %v1040
          %v1070 = vmul.f32 %v1069, 0.6931472
          %v1071 = vlog2.pop %v1041
          %v1072 = vmul.f32 %v1071, 0.6931472
          %v1073 = vlog2.pop %v1042
          %v1074 = vmul.f32 %v1073, 0.6931472
          %v1075 = vadd.f32 %v1011, %v1044
          %v1076 = vadd.f32 %v1012, %v1046
          %v1077 = vadd.f32 %v1013, %v1048
          %v1078 = vadd.f32 %v1014, %v1050
          %v1079 = vadd.f32 %v1015, %v1052
          %v1080 = vadd.f32 %v1016, %v1054
          %v1081 = vadd.f32 %v1017, %v1056
          %v1082 = vadd.f32 %v1018, %v1058
          %v1083 = vadd.f32 %v1019, %v1060
          %v1084 = vadd.f32 %v1020, %v1062
          %v1085 = vadd.f32 %v1021, %v1064
          %v1086 = vadd.f32 %v1022, %v1066
          %v1087 = vadd.f32 %v1023, %v1068
          %v1088 = vadd.f32 %v1024, %v1070
          %v1089 = vadd.f32 %v1025, %v1072
          %v1090 = vadd.f32 %v1026, %v1074
          %vm1091 = vcmp.ne.s32.totalorder %v309, 4294967196
          %vm1092 = vcmp.ne.s32.totalorder %v310, 4294967196
          %vm1093 = vcmp.ne.s32.totalorder %v311, 4294967196
          %vm1094 = vcmp.ne.s32.totalorder %v312, 4294967196
          %vm1095 = vcmp.ne.s32.totalorder %v313, 4294967196
          %vm1096 = vcmp.ne.s32.totalorder %v314, 4294967196
          %vm1097 = vcmp.ne.s32.totalorder %v315, 4294967196
          %vm1098 = vcmp.ne.s32.totalorder %v316, 4294967196
          %vm1099 = vcmp.ne.s32.totalorder %v317, 4294967196
          %vm1100 = vcmp.ne.s32.totalorder %v318, 4294967196
          %vm1101 = vcmp.ne.s32.totalorder %v319, 4294967196
          %vm1102 = vcmp.ne.s32.totalorder %v320, 4294967196
          %vm1103 = vcmp.ne.s32.totalorder %v321, 4294967196
          %vm1104 = vcmp.ne.s32.totalorder %v322, 4294967196
          %vm1105 = vcmp.ne.s32.totalorder %v323, 4294967196
          %vm1106 = vcmp.ne.s32.totalorder %v324, 4294967196
          %v1107 = vld [vmem:[#allocation4] sm:$0xff]
          %v1108 = vld [vmem:[#allocation4 + $0x8] sm:$0xff]
          %v1109 = vld [vmem:[#allocation4 + $0x10] sm:$0xff]
          %v1110 = vld [vmem:[#allocation4 + $0x18] sm:$0xff]
          %v1111 = vld [vmem:[#allocation4 + $0x20] sm:$0xff]
          %v1112 = vld [vmem:[#allocation4 + $0x28] sm:$0xff]
          %v1113 = vld [vmem:[#allocation4 + $0x30] sm:$0xff]
          %v1114 = vld [vmem:[#allocation4 + $0x38] sm:$0xff]
          %v1115 = vld [vmem:[#allocation4 + $0x40] sm:$0xff]
          %v1116 = vld [vmem:[#allocation4 + $0x48] sm:$0xff]
          %v1117 = vld [vmem:[#allocation4 + $0x50] sm:$0xff]
          %v1118 = vld [vmem:[#allocation4 + $0x58] sm:$0xff]
          %v1119 = vld [vmem:[#allocation4 + $0x60] sm:$0xff]
          %v1120 = vld [vmem:[#allocation4 + $0x68] sm:$0xff]
          %v1121 = vld [vmem:[#allocation4 + $0x70] sm:$0xff]
          %v1122 = vld [vmem:[#allocation4 + $0x78] sm:$0xff]
          %v1123 = vsub.f32 %v1075, %v1107
          %v1124 = vsub.f32 %v1076, %v1108
          %v1125 = vsub.f32 %v1077, %v1109
          %v1126 = vsub.f32 %v1078, %v1110
          %v1127 = vsub.f32 %v1079, %v1111
          %v1128 = vsub.f32 %v1080, %v1112
          %v1129 = vsub.f32 %v1081, %v1113
          %v1130 = vsub.f32 %v1082, %v1114
          %v1131 = vsub.f32 %v1083, %v1115
          %v1132 = vsub.f32 %v1084, %v1116
          %v1133 = vsub.f32 %v1085, %v1117
          %v1134 = vsub.f32 %v1086, %v1118
          %v1135 = vsub.f32 %v1087, %v1119
          %v1136 = vsub.f32 %v1088, %v1120
          %v1137 = vsub.f32 %v1089, %v1121
          %v1138 = vsub.f32 %v1090, %v1122
          %v1139 = vsel %vm1091, %v1123, 0.0
          %v1140 = vsel %vm1092, %v1124, 0.0
          %v1141 = vsel %vm1093, %v1125, 0.0
          %v1142 = vsel %vm1094, %v1126, 0.0
          %v1143 = vsel %vm1095, %v1127, 0.0
          %v1144 = vsel %vm1096, %v1128, 0.0
          %v1145 = vsel %vm1097, %v1129, 0.0
          %v1146 = vsel %vm1098, %v1130, 0.0
          %v1147 = vsel %vm1099, %v1131, 0.0
          %v1148 = vsel %vm1100, %v1132, 0.0
          %v1149 = vsel %vm1101, %v1133, 0.0
          %v1150 = vsel %vm1102, %v1134, 0.0
          %v1151 = vsel %vm1103, %v1135, 0.0
          %v1152 = vsel %vm1104, %v1136, 0.0
          %v1153 = vsel %vm1105, %v1137, 0.0
          %v1154 = vsel %vm1106, %v1138, 0.0
          %v1155 = vsel %vm766, %v1139, 0.0
          %v1156 = vsel %vm766, %v1140, 0.0
          %v1157 = vadd.f32 %v1155, %v1156
          %v1158 = vsel %vm766, %v1141, 0.0
          %v1159 = vadd.f32 %v1157, %v1158
          %v1160 = vsel %vm766, %v1142, 0.0
          %v1161 = vadd.f32 %v1159, %v1160
          %v1162 = vsel %vm766, %v1143, 0.0
          %v1163 = vadd.f32 %v1161, %v1162
          %v1164 = vsel %vm766, %v1144, 0.0
          %v1165 = vadd.f32 %v1163, %v1164
          %v1166 = vsel %vm766, %v1145, 0.0
          %v1167 = vadd.f32 %v1165, %v1166
          %v1168 = vsel %vm766, %v1146, 0.0
          %v1169 = vadd.f32 %v1167, %v1168
          %v1170 = vsel %vm766, %v1147, 0.0
          %v1171 = vadd.f32 %v1169, %v1170
          %v1172 = vsel %vm766, %v1148, 0.0
          %v1173 = vadd.f32 %v1171, %v1172
          %v1174 = vsel %vm766, %v1149, 0.0
          %v1175 = vadd.f32 %v1173, %v1174
          %v1176 = vsel %vm766, %v1150, 0.0
          %v1177 = vadd.f32 %v1175, %v1176
          %v1178 = vsel %vm766, %v1151, 0.0
          %v1179 = vadd.f32 %v1177, %v1178
          %v1180 = vsel %vm766, %v1152, 0.0
          %v1181 = vadd.f32 %v1179, %v1180
          %v1182 = vsel %vm766, %v1153, 0.0
          %v1183 = vadd.f32 %v1181, %v1182
          %v1184 = vsel %vm766, %v1154, 0.0
          %v1185 = vadd.f32 %v1183, %v1184
          %1186 = vadd.xlane.f32.xlu0 %v1185
          %v1187 = vpop.xlane.xlu0 %1186
          %v1188 = vrot.slane %v1187, 4
          %v1189 = vadd.f32 %v1187, %v1188
          %v1190 = vrot.slane %v1189, 2
          %v1191 = vadd.f32 %v1189, %v1190
          %v1192 = vrot.slane %v1191, 1
          %v1193 = vadd.f32 %v1191, %v1192
          %s1194 = vtos %v1193
          %v1195 = vsel %vm1091, 1, 0
          %v1196 = vsel %vm1092, 1, 0
          %v1197 = vsel %vm1093, 1, 0
          %v1198 = vsel %vm1094, 1, 0
          %v1199 = vsel %vm1095, 1, 0
          %v1200 = vsel %vm1096, 1, 0
          %v1201 = vsel %vm1097, 1, 0
          %v1202 = vsel %vm1098, 1, 0
          %v1203 = vsel %vm1099, 1, 0
          %v1204 = vsel %vm1100, 1, 0
          %v1205 = vsel %vm1101, 1, 0
          %v1206 = vsel %vm1102, 1, 0
          %v1207 = vsel %vm1103, 1, 0
          %v1208 = vsel %vm1104, 1, 0
          %v1209 = vsel %vm1105, 1, 0
          %v1210 = vsel %vm1106, 1, 0
          %v1211 = vcvt.s32.f32 %v1195
          %v1212 = vcvt.s32.f32 %v1196
          %v1213 = vcvt.s32.f32 %v1197
          %v1214 = vcvt.s32.f32 %v1198
          %v1215 = vcvt.s32.f32 %v1199
          %v1216 = vcvt.s32.f32 %v1200
          %v1217 = vcvt.s32.f32 %v1201
          %v1218 = vcvt.s32.f32 %v1202
          %v1219 = vcvt.s32.f32 %v1203
          %v1220 = vcvt.s32.f32 %v1204
          %v1221 = vcvt.s32.f32 %v1205
          %v1222 = vcvt.s32.f32 %v1206
          %v1223 = vcvt.s32.f32 %v1207
          %v1224 = vcvt.s32.f32 %v1208
          %v1225 = vcvt.s32.f32 %v1209
          %v1226 = vcvt.s32.f32 %v1210
          %v1227 = vsel %vm766, %v1211, 0.0
          %v1228 = vsel %vm766, %v1212, 0.0
          %v1229 = vadd.f32 %v1227, %v1228
          %v1230 = vsel %vm766, %v1213, 0.0
          %v1231 = vadd.f32 %v1229, %v1230
          %v1232 = vsel %vm766, %v1214, 0.0
          %v1233 = vadd.f32 %v1231, %v1232
          %v1234 = vsel %vm766, %v1215, 0.0
          %v1235 = vadd.f32 %v1233, %v1234
          %v1236 = vsel %vm766, %v1216, 0.0
          %v1237 = vadd.f32 %v1235, %v1236
          %v1238 = vsel %vm766, %v1217, 0.0
          %v1239 = vadd.f32 %v1237, %v1238
          %v1240 = vsel %vm766, %v1218, 0.0
          %v1241 = vadd.f32 %v1239, %v1240
          %v1242 = vsel %vm766, %v1219, 0.0
          %v1243 = vadd.f32 %v1241, %v1242
          %v1244 = vsel %vm766, %v1220, 0.0
          %v1245 = vadd.f32 %v1243, %v1244
          %v1246 = vsel %vm766, %v1221, 0.0
          %v1247 = vadd.f32 %v1245, %v1246
          %v1248 = vsel %vm766, %v1222, 0.0
          %v1249 = vadd.f32 %v1247, %v1248
          %v1250 = vsel %vm766, %v1223, 0.0
          %v1251 = vadd.f32 %v1249, %v1250
          %v1252 = vsel %vm766, %v1224, 0.0
          %v1253 = vadd.f32 %v1251, %v1252
          %v1254 = vsel %vm766, %v1225, 0.0
          %v1255 = vadd.f32 %v1253, %v1254
          %v1256 = vsel %vm766, %v1226, 0.0
          %v1257 = vadd.f32 %v1255, %v1256
          %1258 = vadd.xlane.f32.xlu0 %v1257
          %v1259 = vpop.xlane.xlu0 %1258
          %v1260 = vrot.slane %v1259, 4
          %v1261 = vadd.f32 %v1259, %v1260
          %v1262 = vrot.slane %v1261, 2
          %v1263 = vadd.f32 %v1261, %v1262
          %v1264 = vrot.slane %v1263, 1
          %v1265 = vadd.f32 %v1263, %v1264
          %s1266 = vtos %v1265
          %vm1267 = vcmp.eq.s32.totalorder %v327, 0
          %vm1268 = vcmp.eq.s32.totalorder %v327, 1
          %v1269 = vstv %s1266
          %v1270 = vsel %vm1268, %v1269, 0.0
          %v1271 = vstv %s1194
          %v1272 = vsel %vm1267, %v1271, %v1270
          %1273 = vst [vmem:[%s207] sm:$0x1] %v1272
        $region40: #{tpu_custom_call.1} parent=27 // pred_fallthru
          _
        %s1274 = sand.u32 %s93, 1
        %s1275 = scalar_lea.sflag [#allocation7], %s1274
        %s1276 = sand.u32 %s93, 1
        %s1277 = scalar_lea.vmem [#allocation8], %s1276
        // Predicated region
        $region41: #{tpu_custom_call.1} parent=27 // pred_check
          %p1278 = pneg %p103
        $region42: #{tpu_custom_call.1} parent=27 // pred_check_branch
          %1280 = sbr.rel (%p1278) target = $region44
        $region43: #{tpu_custom_call.1} parent=27 // pred_region
          %1282 = vsyncadd %s1275, 0
          %s1283 = scalar_lea.hbm %s2, %s23
          %s1285 = sshll.u32 %s1277, 4
          %s1286 = int_to_ptr.vmem [resolvable:$true] %s1285
          %s1287 = sshll.u32 %s1283, 4
          %s1288 = int_to_ptr.hbm [resolvable:$true] %s1287
          %1290 = dma.vmem_to_hbm [thread:$0]  %s1286, 16, %s1288, %s1275
        $region44: #{tpu_custom_call.1} parent=27 // pred_fallthru
          _
      $region28: #{tpu_custom_call.1} parent=5 // pred_fallthru
        _
      %p1291 = scmp.le.s32.totalorder 2, %s14
      // Predicated region
      $region45: #{tpu_custom_call.1} parent=5 // pred_check
        %p1292 = pneg %p1291
      $region46: #{tpu_custom_call.1} parent=5 // pred_check_branch
        %1294 = sbr.rel (%p1292) target = $region48
      $region47: #{tpu_custom_call.1} parent=5 // pred_region
        %s1295 = ssub.s32 %s14, 2
        // Predicated region
        $region49: #{tpu_custom_call.1} parent=47 // pred_check
          %p1296 = pneg %p109
        $region50: #{tpu_custom_call.1} parent=47 // pred_check_branch
          %1298 = sbr.rel (%p1296) target = $region52
        $region51: #{tpu_custom_call.1} parent=47 // pred_region
          %s1299 = sand.u32 %s94, 1
          %s1300 = scalar_lea.sflag [#allocation7], %s1299
          %s1301 = sand.u32 %s94, 1
          %s1302 = scalar_lea.vmem [#allocation8], %s1301
          %1304 = dma.done %s1300, 16
        $region52: #{tpu_custom_call.1} parent=47 // pred_fallthru
          _
      $region48: #{tpu_custom_call.1} parent=5 // pred_fallthru
        _
    $region6: #{tpu_custom_call.1} parent=1 // loop_footer
      %s18 = sadd.s32 1, %s14
    $region7: #{tpu_custom_call.1} parent=1 // loop_footer_branch
      %13 = sbr.rel target = $region3
    $region8: #{tpu_custom_call.1} parent=1 // loop_exit
      _
    %1305 = vsyncpa [#allocation6], 1
    %s1306 = scalar_lea.sflag [#allocation6], 1
    %1307 = vsyncpa %s1306, 1
    %1308 = vsyncpa [#allocation7], 1
    %s1309 = scalar_lea.sflag [#allocation7], 1
    %1310 = vsyncpa %s1309, 1

</llo_original>
